<compile_context>
chip_gen: v5e
topology: v5e:2x2
jax: 0.10.0
libtpu: 0.0.40
codegen_flags: <defaults>
</compile_context>

<pallas_src>
import functools

import jax
import jax.numpy as jnp
from jax import lax
from jax.experimental import pallas as pl
from jax.experimental.pallas import tpu as pltpu


def _conv3_1_kernel(alpha_ref, cols_ref, w1_ref, w23_ref, out_ref, *, H, W, C1):
    """Fused Conv3x3 -> PReLU -> Conv3x3 -> Conv1x1 for one image.

    alpha_ref : SMEM (1,)           PReLU parameter
    cols_ref  : [1, H*W, 9*Cin]     conv31 reflect-padded im2col
    w1_ref    : [9*Cin, C1]         fused conv31 weights (tap-major rows)
    w23_ref   : [3, 3, C1, C1]      conv32 weights with the 1x1 conv folded in
    out_ref   : [1, H*W, C1]
    """
    alpha = alpha_ref[0]

    # ---- stage 1: conv31 as ONE fused MXU matmul over the 9*Cin im2col ----
    y = jnp.dot(cols_ref[0], w1_ref[...],
                preferred_element_type=jnp.float32)            # [HW, C1]
    y = jnp.where(y > 0, y, alpha * y)                         # PReLU
    q0 = y.reshape(H, W, C1)       # W % 8 == 0 -> pure tile regrouping, no relayout

    # ---- reflect column (W) shifts: q_j[h, w] = y[h, reflect(w + j)] ----
    # One small sublane-axis slice+concat per variant, computed once and
    # reused by all three conv32 row offsets.
    q_m1 = jnp.concatenate([q0[:, 1:2], q0[:, :W - 1]], axis=1)     # cols [1,0,...,W-2]
    q_p1 = jnp.concatenate([q0[:, 1:], q0[:, W - 2:W - 1]], axis=1)  # cols [1..W-1,W-2]
    col_variants = (q_m1, q0, q_p1)

    # ---- reflect row (H) shifts: major (untiled) axis -> plain copies ----
    def row_shift(t, dy):
        if dy == 0:
            return t
        if dy < 0:                                                   # rows [1,0,...,H-2]
            return jnp.concatenate([t[1:2], t[:H - 1]], axis=0)
        return jnp.concatenate([t[1:], t[H - 2:H - 1]], axis=0)      # rows [1..H-1,H-2]

    # ---- stage 2: conv32 with the trailing 1x1 conv folded into its weights ----
    acc = jnp.zeros((H * W, C1), jnp.float32)
    for a, dy in enumerate((-1, 0, 1)):            # conv32 row offset
        for j in range(3):                         # conv32 column offset (j - 1)
            win = row_shift(col_variants[j], dy).reshape(H * W, C1)
            acc = acc + jnp.dot(win, w23_ref[a, j],
                                preferred_element_type=jnp.float32)

    out_ref[0] = acc.astype(out_ref.dtype)


def conv3_1_pallas(x, w1, alpha, w2, w3):
    """x: [B, Cin, H, W] (NCHW, like the PyTorch module). Returns [B, C1, H, W]."""
    B, Cin, H, W = x.shape
    C1 = w1.shape[0]
    assert w1.shape == (C1, Cin, 3, 3)
    assert w2.shape == (C1, C1, 3, 3)
    assert w3.shape[:2] == (C1, C1)
    assert H >= 2 and W >= 2, "ReflectionPad2d(1) needs spatial dims >= 2"
    assert W % 8 == 0, "W must be a multiple of 8 (sublane tile) for no-copy reshapes"
    HW = H * W

    # ---------------- wrapper: pure layout plumbing (XLA) ----------------
    xh = jnp.transpose(x, (0, 2, 3, 1))                                   # NHWC
    xp = jnp.pad(xh, ((0, 0), (1, 1), (1, 1), (0, 0)), mode="reflect")    # [B,H+2,W+2,Cin]

    # conv31 im2col (single variant), taps ordered (dy, dx, cin) — static slices only.
    taps = []
    for dy in range(3):
        for dx in range(3):
            taps.append(xp[:, dy:dy + H, dx:dx + W, :])                   # [B,H,W,Cin]
    cols = jnp.concatenate(taps, axis=-1).reshape(B, HW, 9 * Cin)

    # Fused conv31 weight: rows ordered (dy, dx, cin) to match the im2col order.
    w1f = jnp.transpose(w1, (2, 3, 1, 0)).reshape(9 * Cin, C1)            # [9*Cin, C1]
    # conv32 weights with the trailing 1x1 conv folded in: w23[dy,dx] = W2[dy,dx] @ W3.
    m2 = jnp.transpose(w2, (2, 3, 1, 0))                                  # [3,3,C1,C1] (i,o)
    m3 = jnp.transpose(w3.reshape(C1, C1))                                # [C1,C1]     (o,p)
    w23 = jnp.einsum("yxio,op->yxip", m2, m3)                             # [3,3,C1,C1]

    alpha_arr = jnp.asarray(alpha, jnp.float32).reshape(1)

    kernel = functools.partial(_conv3_1_kernel, H=H, W=W, C1=C1)
    out = pl.pallas_call(
        kernel,
        out_shape=jax.ShapeDtypeStruct((B, HW, C1), x.dtype),
        grid=(B,),
        in_specs=[
            pl.BlockSpec(memory_space=pltpu.MemorySpace.SMEM),            # PReLU alpha
            pl.BlockSpec((1, HW, 9 * Cin), lambda i: (i, 0, 0)),          # im2col
            pl.BlockSpec((9 * Cin, C1), lambda i: (0, 0)),                # fused W1
            pl.BlockSpec((3, 3, C1, C1), lambda i: (0, 0, 0, 0)),         # folded W2*W3
        ],
        out_specs=pl.BlockSpec((1, HW, C1), lambda i: (i, 0, 0)),
        compiler_params=pltpu.CompilerParams(
            dimension_semantics=("parallel",)),
    )(alpha_arr, cols, w1f, w23)

    return jnp.transpose(out.reshape(B, H, W, C1), (0, 3, 1, 2))          # back to NCHW


def conv3_1_ref(x, w1, alpha, w2, w3):
    """Pure-JAX reference mirroring the PyTorch forward exactly (NCHW / OIHW)."""
    dn = ("NCHW", "OIHW", "NCHW")
    hp = lax.Precision.HIGHEST

    def rpad(t):
        return jnp.pad(t, ((0, 0), (0, 0), (1, 1), (1, 1)), mode="reflect")

    y = lax.conv_general_dilated(rpad(x), w1, (1, 1), "VALID",
                                 dimension_numbers=dn, precision=hp)
    y = jnp.where(y > 0, y, alpha * y)                                    # PReLU
    y = lax.conv_general_dilated(rpad(y), w2, (1, 1), "VALID",
                                 dimension_numbers=dn, precision=hp)
    y = lax.conv_general_dilated(y, w3, (1, 1), "VALID",
                                 dimension_numbers=dn, precision=hp)
    return y


if __name__ == "__main__":
    # Small shapes consistent with the module: planes_3=8, planes_1=32, 16x16 spatial.
    B, CIN, C1, H, W = 2, 8, 32, 16, 16

    key = jax.random.PRNGKey(0)
    kx, k1, k2, k3 = jax.random.split(key, 4)
    x = jax.random.normal(kx, (B, CIN, H, W), dtype=jnp.float32)
    w1 = jax.random.normal(k1, (C1, CIN, 3, 3), dtype=jnp.float32) * 0.1
    w2 = jax.random.normal(k2, (C1, C1, 3, 3), dtype=jnp.float32) * 0.1
    w3 = jax.random.normal(k3, (C1, C1, 1, 1), dtype=jnp.float32) * 0.1
    alpha = jnp.float32(0.25)          # nn.PReLU() default init

    out = conv3_1_pallas(x, w1, alpha, w2, w3)
    out = jax.block_until_ready(out)

    ref = conv3_1_ref(x, w1, alpha, w2, w3)
    assert out.shape == (B, C1, H, W)
    err = float(jnp.max(jnp.abs(out - ref)))
    assert jnp.allclose(out, ref, atol=2e-3, rtol=2e-3), f"mismatch vs reference, max err {err}"

    print("KERNEL_OK")
</pallas_src>

<mosaic_0001>
module attributes {stable_mosaic.version = 11 : i64} {
  func.func @_conv3_1_kernel(%arg0: i32, %arg1: memref<1xf32, #tpu.memory_space<smem>>, %arg2: memref<1x256x72xf32, #tpu.memory_space<vmem>>, %arg3: memref<72x32xf32, #tpu.memory_space<vmem>>, %arg4: memref<3x3x32x32xf32, #tpu.memory_space<vmem>>, %arg5: memref<1x256x32xf32, #tpu.memory_space<vmem>>) attributes {dimension_semantics = [#tpu.dimension_semantics<parallel>], iteration_bounds = array<i64: 2>, scalar_prefetch = 0 : i64, scratch_operands = 0 : i64, tpu.core_type = #tpu.core_type<tc>, window_params = [{transform_indices = @transform_0, window_bounds = array<i64: 1>}, {transform_indices = @transform_1, window_bounds = array<i64: 1, 256, 72>}, {pipeline_mode = #tpu.pipeline_mode<synchronous>, transform_indices = @transform_2, window_bounds = array<i64: 72, 32>}, {pipeline_mode = #tpu.pipeline_mode<synchronous>, transform_indices = @transform_3, window_bounds = array<i64: 3, 3, 32, 32>}, {transform_indices = @transform_4, window_bounds = array<i64: 1, 256, 32>}]} {
    %c0 = arith.constant 0 : index
    %0 = memref.load %arg1[%c0] : memref<1xf32, #tpu.memory_space<smem>>
    %c0_0 = arith.constant 0 : index
    %c0_1 = arith.constant 0 : index
    %c0_2 = arith.constant 0 : index
    %1 = vector.load %arg2[%c0_0, %c0_1, %c0_2] : memref<1x256x72xf32, #tpu.memory_space<vmem>>, vector<1x256x72xf32>
    %2 = vector.shape_cast %1 : vector<1x256x72xf32> to vector<256x72xf32>
    %c0_3 = arith.constant 0 : index
    %c0_4 = arith.constant 0 : index
    %3 = vector.load %arg3[%c0_3, %c0_4] : memref<72x32xf32, #tpu.memory_space<vmem>>, vector<72x32xf32>
    %cst = arith.constant dense<0.000000e+00> : vector<256x32xf32>
    %4 = tpu.matmul %2, %3, %cst {dimension_numbers = #tpu.dot_dimension_numbers<[1], [0], [0], [1], [0, 0, 1, 1], [], []>} : vector<256x72xf32>, vector<72x32xf32>, vector<256x32xf32> -> vector<256x32xf32>
    %cst_5 = arith.constant 0.000000e+00 : f32
    %5 = vector.broadcast %cst_5 : f32 to vector<256x32xf32>
    %6 = arith.cmpf ogt, %4, %5 : vector<256x32xf32>
    %7 = vector.broadcast %0 : f32 to vector<256x32xf32>
    %8 = arith.mulf %7, %4 : vector<256x32xf32>
    %9 = arith.select %6, %4, %8 : vector<256x32xi1>, vector<256x32xf32>
    %10 = vector.shape_cast %9 : vector<256x32xf32> to vector<16x16x32xf32>
    %11 = vector.extract_strided_slice %10 {offsets = [0, 1, 0], sizes = [16, 1, 32], strides = [1, 1, 1]} : vector<16x16x32xf32> to vector<16x1x32xf32>
    %12 = vector.extract_strided_slice %10 {offsets = [0, 0, 0], sizes = [16, 15, 32], strides = [1, 1, 1]} : vector<16x16x32xf32> to vector<16x15x32xf32>
    %13 = tpu.concatenate %11, %12 in 1 : vector<16x1x32xf32>, vector<16x15x32xf32> -> vector<16x16x32xf32>
    %14 = vector.extract_strided_slice %10 {offsets = [0, 1, 0], sizes = [16, 15, 32], strides = [1, 1, 1]} : vector<16x16x32xf32> to vector<16x15x32xf32>
    %15 = vector.extract_strided_slice %10 {offsets = [0, 14, 0], sizes = [16, 1, 32], strides = [1, 1, 1]} : vector<16x16x32xf32> to vector<16x1x32xf32>
    %16 = tpu.concatenate %14, %15 in 1 : vector<16x15x32xf32>, vector<16x1x32xf32> -> vector<16x16x32xf32>
    %cst_6 = arith.constant 0.000000e+00 : f32
    %17 = vector.broadcast %cst_6 : f32 to vector<256x32xf32>
    %18 = vector.extract_strided_slice %13 {offsets = [1, 0, 0], sizes = [1, 16, 32], strides = [1, 1, 1]} : vector<16x16x32xf32> to vector<1x16x32xf32>
    %19 = vector.extract_strided_slice %13 {offsets = [0, 0, 0], sizes = [15, 16, 32], strides = [1, 1, 1]} : vector<16x16x32xf32> to vector<15x16x32xf32>
    %20 = tpu.concatenate %18, %19 in 0 : vector<1x16x32xf32>, vector<15x16x32xf32> -> vector<16x16x32xf32>
    %21 = vector.shape_cast %20 : vector<16x16x32xf32> to vector<256x32xf32>
    %c0_7 = arith.constant 0 : index
    %c0_8 = arith.constant 0 : index
    %c0_9 = arith.constant 0 : index
    %c0_10 = arith.constant 0 : index
    %22 = vector.load %arg4[%c0_7, %c0_8, %c0_9, %c0_10] : memref<3x3x32x32xf32, #tpu.memory_space<vmem>>, vector<1x1x32x32xf32>
    %23 = vector.shape_cast %22 : vector<1x1x32x32xf32> to vector<32x32xf32>
    %cst_11 = arith.constant dense<0.000000e+00> : vector<256x32xf32>
    %24 = tpu.matmul %21, %23, %cst_11 {dimension_numbers = #tpu.dot_dimension_numbers<[1], [0], [0], [1], [0, 0, 1, 1], [], []>} : vector<256x32xf32>, vector<32x32xf32>, vector<256x32xf32> -> vector<256x32xf32>
    %25 = arith.addf %17, %24 : vector<256x32xf32>
    %26 = vector.extract_strided_slice %10 {offsets = [1, 0, 0], sizes = [1, 16, 32], strides = [1, 1, 1]} : vector<16x16x32xf32> to vector<1x16x32xf32>
    %27 = vector.extract_strided_slice %10 {offsets = [0, 0, 0], sizes = [15, 16, 32], strides = [1, 1, 1]} : vector<16x16x32xf32> to vector<15x16x32xf32>
    %28 = tpu.concatenate %26, %27 in 0 : vector<1x16x32xf32>, vector<15x16x32xf32> -> vector<16x16x32xf32>
    %29 = vector.shape_cast %28 : vector<16x16x32xf32> to vector<256x32xf32>
    %c0_12 = arith.constant 0 : index
    %c1 = arith.constant 1 : index
    %c0_13 = arith.constant 0 : index
    %c0_14 = arith.constant 0 : index
    %30 = vector.load %arg4[%c0_12, %c1, %c0_13, %c0_14] : memref<3x3x32x32xf32, #tpu.memory_space<vmem>>, vector<1x1x32x32xf32>
    %31 = vector.shape_cast %30 : vector<1x1x32x32xf32> to vector<32x32xf32>
    %cst_15 = arith.constant dense<0.000000e+00> : vector<256x32xf32>
    %32 = tpu.matmul %29, %31, %cst_15 {dimension_numbers = #tpu.dot_dimension_numbers<[1], [0], [0], [1], [0, 0, 1, 1], [], []>} : vector<256x32xf32>, vector<32x32xf32>, vector<256x32xf32> -> vector<256x32xf32>
    %33 = arith.addf %25, %32 : vector<256x32xf32>
    %34 = vector.extract_strided_slice %16 {offsets = [1, 0, 0], sizes = [1, 16, 32], strides = [1, 1, 1]} : vector<16x16x32xf32> to vector<1x16x32xf32>
    %35 = vector.extract_strided_slice %16 {offsets = [0, 0, 0], sizes = [15, 16, 32], strides = [1, 1, 1]} : vector<16x16x32xf32> to vector<15x16x32xf32>
    %36 = tpu.concatenate %34, %35 in 0 : vector<1x16x32xf32>, vector<15x16x32xf32> -> vector<16x16x32xf32>
    %37 = vector.shape_cast %36 : vector<16x16x32xf32> to vector<256x32xf32>
    %c0_16 = arith.constant 0 : index
    %c2 = arith.constant 2 : index
    %c0_17 = arith.constant 0 : index
    %c0_18 = arith.constant 0 : index
    %38 = vector.load %arg4[%c0_16, %c2, %c0_17, %c0_18] : memref<3x3x32x32xf32, #tpu.memory_space<vmem>>, vector<1x1x32x32xf32>
    %39 = vector.shape_cast %38 : vector<1x1x32x32xf32> to vector<32x32xf32>
    %cst_19 = arith.constant dense<0.000000e+00> : vector<256x32xf32>
    %40 = tpu.matmul %37, %39, %cst_19 {dimension_numbers = #tpu.dot_dimension_numbers<[1], [0], [0], [1], [0, 0, 1, 1], [], []>} : vector<256x32xf32>, vector<32x32xf32>, vector<256x32xf32> -> vector<256x32xf32>
    %41 = arith.addf %33, %40 : vector<256x32xf32>
    %42 = vector.shape_cast %13 : vector<16x16x32xf32> to vector<256x32xf32>
    %c1_20 = arith.constant 1 : index
    %c0_21 = arith.constant 0 : index
    %c0_22 = arith.constant 0 : index
    %c0_23 = arith.constant 0 : index
    %43 = vector.load %arg4[%c1_20, %c0_21, %c0_22, %c0_23] : memref<3x3x32x32xf32, #tpu.memory_space<vmem>>, vector<1x1x32x32xf32>
    %44 = vector.shape_cast %43 : vector<1x1x32x32xf32> to vector<32x32xf32>
    %cst_24 = arith.constant dense<0.000000e+00> : vector<256x32xf32>
    %45 = tpu.matmul %42, %44, %cst_24 {dimension_numbers = #tpu.dot_dimension_numbers<[1], [0], [0], [1], [0, 0, 1, 1], [], []>} : vector<256x32xf32>, vector<32x32xf32>, vector<256x32xf32> -> vector<256x32xf32>
    %46 = arith.addf %41, %45 : vector<256x32xf32>
    %47 = vector.shape_cast %10 : vector<16x16x32xf32> to vector<256x32xf32>
    %c1_25 = arith.constant 1 : index
    %c1_26 = arith.constant 1 : index
    %c0_27 = arith.constant 0 : index
    %c0_28 = arith.constant 0 : index
    %48 = vector.load %arg4[%c1_25, %c1_26, %c0_27, %c0_28] : memref<3x3x32x32xf32, #tpu.memory_space<vmem>>, vector<1x1x32x32xf32>
    %49 = vector.shape_cast %48 : vector<1x1x32x32xf32> to vector<32x32xf32>
    %cst_29 = arith.constant dense<0.000000e+00> : vector<256x32xf32>
    %50 = tpu.matmul %47, %49, %cst_29 {dimension_numbers = #tpu.dot_dimension_numbers<[1], [0], [0], [1], [0, 0, 1, 1], [], []>} : vector<256x32xf32>, vector<32x32xf32>, vector<256x32xf32> -> vector<256x32xf32>
    %51 = arith.addf %46, %50 : vector<256x32xf32>
    %52 = vector.shape_cast %16 : vector<16x16x32xf32> to vector<256x32xf32>
    %c1_30 = arith.constant 1 : index
    %c2_31 = arith.constant 2 : index
    %c0_32 = arith.constant 0 : index
    %c0_33 = arith.constant 0 : index
    %53 = vector.load %arg4[%c1_30, %c2_31, %c0_32, %c0_33] : memref<3x3x32x32xf32, #tpu.memory_space<vmem>>, vector<1x1x32x32xf32>
    %54 = vector.shape_cast %53 : vector<1x1x32x32xf32> to vector<32x32xf32>
    %cst_34 = arith.constant dense<0.000000e+00> : vector<256x32xf32>
    %55 = tpu.matmul %52, %54, %cst_34 {dimension_numbers = #tpu.dot_dimension_numbers<[1], [0], [0], [1], [0, 0, 1, 1], [], []>} : vector<256x32xf32>, vector<32x32xf32>, vector<256x32xf32> -> vector<256x32xf32>
    %56 = arith.addf %51, %55 : vector<256x32xf32>
    %57 = vector.extract_strided_slice %13 {offsets = [1, 0, 0], sizes = [15, 16, 32], strides = [1, 1, 1]} : vector<16x16x32xf32> to vector<15x16x32xf32>
    %58 = vector.extract_strided_slice %13 {offsets = [14, 0, 0], sizes = [1, 16, 32], strides = [1, 1, 1]} : vector<16x16x32xf32> to vector<1x16x32xf32>
    %59 = tpu.concatenate %57, %58 in 0 : vector<15x16x32xf32>, vector<1x16x32xf32> -> vector<16x16x32xf32>
    %60 = vector.shape_cast %59 : vector<16x16x32xf32> to vector<256x32xf32>
    %c2_35 = arith.constant 2 : index
    %c0_36 = arith.constant 0 : index
    %c0_37 = arith.constant 0 : index
    %c0_38 = arith.constant 0 : index
    %61 = vector.load %arg4[%c2_35, %c0_36, %c0_37, %c0_38] : memref<3x3x32x32xf32, #tpu.memory_space<vmem>>, vector<1x1x32x32xf32>
    %62 = vector.shape_cast %61 : vector<1x1x32x32xf32> to vector<32x32xf32>
    %cst_39 = arith.constant dense<0.000000e+00> : vector<256x32xf32>
    %63 = tpu.matmul %60, %62, %cst_39 {dimension_numbers = #tpu.dot_dimension_numbers<[1], [0], [0], [1], [0, 0, 1, 1], [], []>} : vector<256x32xf32>, vector<32x32xf32>, vector<256x32xf32> -> vector<256x32xf32>
    %64 = arith.addf %56, %63 : vector<256x32xf32>
    %65 = vector.extract_strided_slice %10 {offsets = [1, 0, 0], sizes = [15, 16, 32], strides = [1, 1, 1]} : vector<16x16x32xf32> to vector<15x16x32xf32>
    %66 = vector.extract_strided_slice %10 {offsets = [14, 0, 0], sizes = [1, 16, 32], strides = [1, 1, 1]} : vector<16x16x32xf32> to vector<1x16x32xf32>
    %67 = tpu.concatenate %65, %66 in 0 : vector<15x16x32xf32>, vector<1x16x32xf32> -> vector<16x16x32xf32>
    %68 = vector.shape_cast %67 : vector<16x16x32xf32> to vector<256x32xf32>
    %c2_40 = arith.constant 2 : index
    %c1_41 = arith.constant 1 : index
    %c0_42 = arith.constant 0 : index
    %c0_43 = arith.constant 0 : index
    %69 = vector.load %arg4[%c2_40, %c1_41, %c0_42, %c0_43] : memref<3x3x32x32xf32, #tpu.memory_space<vmem>>, vector<1x1x32x32xf32>
    %70 = vector.shape_cast %69 : vector<1x1x32x32xf32> to vector<32x32xf32>
    %cst_44 = arith.constant dense<0.000000e+00> : vector<256x32xf32>
    %71 = tpu.matmul %68, %70, %cst_44 {dimension_numbers = #tpu.dot_dimension_numbers<[1], [0], [0], [1], [0, 0, 1, 1], [], []>} : vector<256x32xf32>, vector<32x32xf32>, vector<256x32xf32> -> vector<256x32xf32>
    %72 = arith.addf %64, %71 : vector<256x32xf32>
    %73 = vector.extract_strided_slice %16 {offsets = [1, 0, 0], sizes = [15, 16, 32], strides = [1, 1, 1]} : vector<16x16x32xf32> to vector<15x16x32xf32>
    %74 = vector.extract_strided_slice %16 {offsets = [14, 0, 0], sizes = [1, 16, 32], strides = [1, 1, 1]} : vector<16x16x32xf32> to vector<1x16x32xf32>
    %75 = tpu.concatenate %73, %74 in 0 : vector<15x16x32xf32>, vector<1x16x32xf32> -> vector<16x16x32xf32>
    %76 = vector.shape_cast %75 : vector<16x16x32xf32> to vector<256x32xf32>
    %c2_45 = arith.constant 2 : index
    %c2_46 = arith.constant 2 : index
    %c0_47 = arith.constant 0 : index
    %c0_48 = arith.constant 0 : index
    %77 = vector.load %arg4[%c2_45, %c2_46, %c0_47, %c0_48] : memref<3x3x32x32xf32, #tpu.memory_space<vmem>>, vector<1x1x32x32xf32>
    %78 = vector.shape_cast %77 : vector<1x1x32x32xf32> to vector<32x32xf32>
    %cst_49 = arith.constant dense<0.000000e+00> : vector<256x32xf32>
    %79 = tpu.matmul %76, %78, %cst_49 {dimension_numbers = #tpu.dot_dimension_numbers<[1], [0], [0], [1], [0, 0, 1, 1], [], []>} : vector<256x32xf32>, vector<32x32xf32>, vector<256x32xf32> -> vector<256x32xf32>
    %80 = arith.addf %72, %79 : vector<256x32xf32>
    %c0_50 = arith.constant 0 : index
    %c0_51 = arith.constant 0 : index
    %c0_52 = arith.constant 0 : index
    %81 = vector.load %arg5[%c0_50, %c0_51, %c0_52] : memref<1x256x32xf32, #tpu.memory_space<vmem>>, vector<1x256x32xf32>
    %82 = vector.shape_cast %81 : vector<1x256x32xf32> to vector<256x32xf32>
    %83 = vector.shape_cast %80 : vector<256x32xf32> to vector<1x256x32xf32>
    tpu.vector_store %arg5[%c0_50, %c0_51, %c0_52], %83 {strides = array<i32>} : memref<1x256x32xf32, #tpu.memory_space<vmem>>, vector<1x256x32xf32>,
    return
  }
  func.func @transform_0(%arg0: i32) -> i32 {
    %c0_i32 = arith.constant 0 : i32
    %c0_i32_0 = arith.constant 0 : i32
    return %c0_i32 : i32
  }
  func.func @transform_1(%arg0: i32) -> (i32, i32, i32) {
    %c0_i32 = arith.constant 0 : i32
    %c0_i32_0 = arith.constant 0 : i32
    %c0_i32_1 = arith.constant 0 : i32
    return %arg0, %c0_i32, %c0_i32_0 : i32, i32, i32
  }
  func.func @transform_2(%arg0: i32) -> (i32, i32) {
    %c0_i32 = arith.constant 0 : i32
    %c0_i32_0 = arith.constant 0 : i32
    %c0_i32_1 = arith.constant 0 : i32
    return %c0_i32, %c0_i32_0 : i32, i32
  }
  func.func @transform_3(%arg0: i32) -> (i32, i32, i32, i32) {
    %c0_i32 = arith.constant 0 : i32
    %c0_i32_0 = arith.constant 0 : i32
    %c0_i32_1 = arith.constant 0 : i32
    %c0_i32_2 = arith.constant 0 : i32
    %c0_i32_3 = arith.constant 0 : i32
    return %c0_i32, %c0_i32_0, %c0_i32_1, %c0_i32_2 : i32, i32, i32, i32
  }
  func.func @transform_4(%arg0: i32) -> (i32, i32, i32) {
    %c0_i32 = arith.constant 0 : i32
    %c0_i32_0 = arith.constant 0 : i32
    %c0_i32_1 = arith.constant 0 : i32
    return %arg0, %c0_i32, %c0_i32_0 : i32, i32, i32
  }
}

</mosaic_0001>

<llo_original>
// kernel: tpu_custom_call.1
$region0: #{tpu_custom_call.1}
  #allocation0 [shape = 'u32[]', space=smem, size = 0x4, offset = 0x4, fixed_abs, tag = 'smem constant byte address 0x4 - core index']
  #allocation1 [shape = 'u32[72,128]{1,0:T(1,128)}', space=vmem, size = 0x9000, scoped, tag = 'internal scratch']
  #allocation2 [shape = 'f32[1]{0:T(128)S(6)}', space=smem, size = 0x200, scoped, tag = 'scoped memory for tpu_custom_call.1']
  %s0 = inlined_call_operand.<no memory space> [shape: f32[1], index: 0, kind: input, shape index: {}]
  %s1 = inlined_call_operand.vmem [shape: f32[2,256,72], index: 1, kind: input, shape index: {}]
  %s2 = inlined_call_operand.vmem [shape: f32[72,32], index: 2, kind: input, shape index: {}]
  %s3 = inlined_call_operand.vmem [shape: f32[3,3,32,32], index: 3, kind: input, shape index: {}]
  %s4 = inlined_call_operand.vmem [shape: f32[2,256,32], index: 4, kind: output, shape index: {}]
  %s5 = sld [smem:[#allocation0]]
  $region49: #{tpu_custom_call.1} parent=0
    _
  %s7 = ssub.s32 1, %s5
  %s8 = scalar_select 0, %s7, %s5
  %9 = sst [smem:[#allocation2]] %s0
  loop: start=0, step=1, limit=4
  $region2: #{tpu_custom_call.1} parent=0 // loop_pre_header
    _
  $region3: #{tpu_custom_call.1} parent=0 // loop_header
    %s11 = sphi 0, %s15
    %p12 = scmp.ge.s32.totalorder %s11, 4
    %s19 = sphi 0, %s19
    %s21 = sphi 0, %s19
    %s22 = sphi 0, %s21
    %s36 = sphi 0, %s22
    %s42 = sphi 0, %s44
    %s45 = sphi 0, %s42
    %s46 = sphi 0, %s45
    %s62 = sphi 0, %s46
    %s66 = sphi 0, %s66
    %s68 = sphi 0, %s66
    %s69 = sphi 0, %s68
    %s83 = sphi 0, %s69
    %s87 = sphi 0, %s87
    %s89 = sphi 0, %s87
    %s90 = sphi 0, %s89
    %s104 = sphi 0, %s90
    %s110 = sphi 0, %s112
    %s113 = sphi 0, %s110
    %s114 = sphi 0, %s113
    %s130 = sphi 0, %s114
  $region4: #{tpu_custom_call.1} parent=0 // loop_header_branch
    %14 = sbr.rel (%p12) target = $region8
  $region5: #{tpu_custom_call.1} parent=0 // loop_body
    %s16 = ssub.s32 %s11, 1
    %s17 = ssub.s32 %s11, 2
    %s18 = sadd.s32 %s11, 1
    %s20 = sadd.s32 %s19, 1
    %p23 = scmp.eq.s32.totalorder %s11, 1
    %p24 = scmp.ne.s32.totalorder %s19, %s21
    %p25 = scmp.eq.s32.totalorder %s11, 0
    %p26 = por %p24, %p25
    %p27 = scmp.ne.s32.totalorder %s19, %s21
    %p28 = scmp.eq.s32.totalorder %s16, 1
    %p29 = por %p27, %p28
    %p30 = scmp.ne.s32.totalorder %s21, %s22
    %p31 = scmp.eq.s32.totalorder %s16, 0
    %p32 = por %p30, %p31
    %p33 = scmp.ne.s32.totalorder %s21, %s22
    %p34 = scmp.eq.s32.totalorder %s17, 1
    %p35 = por %p33, %p34
    %p37 = scmp.ne.s32.totalorder %s22, %s36
    %p38 = scmp.eq.s32.totalorder %s17, 0
    %p39 = por %p37, %p38
    %s40 = ssub.s32 %s11, %s18
    %p41 = scmp.eq.s32.totalorder %s40, 0
    %s43 = sadd.s32 %s42, 1
    %s44 = scalar_select %p41, %s42, %s43
    %p47 = pneg %p41
    %p48 = scmp.eq.s32.totalorder %s11, 1
    %p49 = por %p47, %p48
    %p50 = scmp.ne.s32.totalorder %s42, %s45
    %p51 = scmp.eq.s32.totalorder %s11, 0
    %p52 = por %p50, %p51
    %p53 = scmp.ne.s32.totalorder %s42, %s45
    %p54 = scmp.eq.s32.totalorder %s16, 1
    %p55 = por %p53, %p54
    %p56 = scmp.ne.s32.totalorder %s45, %s46
    %p57 = scmp.eq.s32.totalorder %s16, 0
    %p58 = por %p56, %p57
    %p59 = scmp.ne.s32.totalorder %s45, %s46
    %p60 = scmp.eq.s32.totalorder %s17, 1
    %p61 = por %p59, %p60
    %p63 = scmp.ne.s32.totalorder %s46, %s62
    %p64 = scmp.eq.s32.totalorder %s17, 0
    %p65 = por %p63, %p64
    %s67 = sadd.s32 %s66, 1
    %p70 = scmp.eq.s32.totalorder %s11, 1
    %p71 = scmp.ne.s32.totalorder %s66, %s68
    %p72 = scmp.eq.s32.totalorder %s11, 0
    %p73 = por %p71, %p72
    %p74 = scmp.ne.s32.totalorder %s66, %s68
    %p75 = scmp.eq.s32.totalorder %s16, 1
    %p76 = por %p74, %p75
    %p77 = scmp.ne.s32.totalorder %s68, %s69
    %p78 = scmp.eq.s32.totalorder %s16, 0
    %p79 = por %p77, %p78
    %p80 = scmp.ne.s32.totalorder %s68, %s69
    %p81 = scmp.eq.s32.totalorder %s17, 1
    %p82 = por %p80, %p81
    %p84 = scmp.ne.s32.totalorder %s69, %s83
    %p85 = scmp.eq.s32.totalorder %s17, 0
    %p86 = por %p84, %p85
    %s88 = sadd.s32 %s87, 1
    %p91 = scmp.eq.s32.totalorder %s11, 1
    %p92 = scmp.ne.s32.totalorder %s87, %s89
    %p93 = scmp.eq.s32.totalorder %s11, 0
    %p94 = por %p92, %p93
    %p95 = scmp.ne.s32.totalorder %s87, %s89
    %p96 = scmp.eq.s32.totalorder %s16, 1
    %p97 = por %p95, %p96
    %p98 = scmp.ne.s32.totalorder %s89, %s90
    %p99 = scmp.eq.s32.totalorder %s16, 0
    %p100 = por %p98, %p99
    %p101 = scmp.ne.s32.totalorder %s89, %s90
    %p102 = scmp.eq.s32.totalorder %s17, 1
    %p103 = por %p101, %p102
    %p105 = scmp.ne.s32.totalorder %s90, %s104
    %p106 = scmp.eq.s32.totalorder %s17, 0
    %p107 = por %p105, %p106
    %s108 = ssub.s32 %s11, %s18
    %p109 = scmp.eq.s32.totalorder %s108, 0
    %s111 = sadd.s32 %s110, 1
    %s112 = scalar_select %p109, %s110, %s111
    %p115 = pneg %p109
    %p116 = scmp.eq.s32.totalorder %s11, 1
    %p117 = por %p115, %p116
    %p118 = scmp.ne.s32.totalorder %s110, %s113
    %p119 = scmp.eq.s32.totalorder %s11, 0
    %p120 = por %p118, %p119
    %p121 = scmp.ne.s32.totalorder %s110, %s113
    %p122 = scmp.eq.s32.totalorder %s16, 1
    %p123 = por %p121, %p122
    %p124 = scmp.ne.s32.totalorder %s113, %s114
    %p125 = scmp.eq.s32.totalorder %s16, 0
    %p126 = por %p124, %p125
    %p127 = scmp.ne.s32.totalorder %s113, %s114
    %p128 = scmp.eq.s32.totalorder %s17, 1
    %p129 = por %p127, %p128
    %p131 = scmp.ne.s32.totalorder %s114, %s130
    %p132 = scmp.eq.s32.totalorder %s17, 0
    %p133 = por %p131, %p132
    %p134 = scmp.le.s32.totalorder 1, %s11
    %p135 = scmp.lt.s32.totalorder %s11, 3
    %p136 = pnand %p134, %p135
    %p137 = pneg %p136
    // Predicated region
    $region9: #{tpu_custom_call.1} parent=5 // pred_check
      _
    $region10: #{tpu_custom_call.1} parent=5 // pred_check_branch
      %139 = sbr.rel (%p136) target = $region12
    $region11: #{tpu_custom_call.1} parent=5 // pred_region
      %s140 = ssub.s32 %s11, 1
      // Predicated region
      $region13: #{tpu_custom_call.1} parent=11 // pred_check
        %p141 = pneg %p32
      $region14: #{tpu_custom_call.1} parent=11 // pred_check_branch
        %143 = sbr.rel (%p141) target = $region16
      $region15: #{tpu_custom_call.1} parent=11 // pred_region
        _
      $region16: #{tpu_custom_call.1} parent=11 // pred_fallthru
        _
      // Predicated region
      $region17: #{tpu_custom_call.1} parent=11 // pred_check
        %p144 = pneg %p79
      $region18: #{tpu_custom_call.1} parent=11 // pred_check_branch
        %146 = sbr.rel (%p144) target = $region20
      $region19: #{tpu_custom_call.1} parent=11 // pred_region
        _
      $region20: #{tpu_custom_call.1} parent=11 // pred_fallthru
        _
      // Predicated region
      $region21: #{tpu_custom_call.1} parent=11 // pred_check
        %p147 = pneg %p100
      $region22: #{tpu_custom_call.1} parent=11 // pred_check_branch
        %149 = sbr.rel (%p147) target = $region24
      $region23: #{tpu_custom_call.1} parent=11 // pred_region
        _
      $region24: #{tpu_custom_call.1} parent=11 // pred_fallthru
        _
    $region12: #{tpu_custom_call.1} parent=5 // pred_fallthru
      _
    %p150 = scmp.lt.s32.totalorder %s11, 2
    // Predicated region
    $region25: #{tpu_custom_call.1} parent=5 // pred_check
      %p151 = pneg %p150
    $region26: #{tpu_custom_call.1} parent=5 // pred_check_branch
      %153 = sbr.rel (%p151) target = $region28
    $region27: #{tpu_custom_call.1} parent=5 // pred_region
      // Predicated region
      $region29: #{tpu_custom_call.1} parent=27 // pred_check
        %p154 = pneg %p52
      $region30: #{tpu_custom_call.1} parent=27 // pred_check_branch
        %156 = sbr.rel (%p154) target = $region32
      $region31: #{tpu_custom_call.1} parent=27 // pred_region
        %p157 = scmp.lt.s32.totalorder %s11, 1
        %s158 = scalar_select %p157, %s11, 1
        %s159 = smul.addr %s158, 32
        %s160 = smul.addr %s159, 8
        %s161 = scalar_lea.vmem %s1, %s160
      $region32: #{tpu_custom_call.1} parent=27 // pred_fallthru
        _
    $region28: #{tpu_custom_call.1} parent=5 // pred_fallthru
      _
    %p162 = scmp.le.s32.totalorder 1, %s11
    %p163 = scmp.lt.s32.totalorder %s11, 3
    %p164 = pnand %p162, %p163
    %p165 = pneg %p164
    // Predicated region
    $region33: #{tpu_custom_call.1} parent=5 // pred_check
      _
    $region34: #{tpu_custom_call.1} parent=5 // pred_check_branch
      %167 = sbr.rel (%p164) target = $region36
    $region35: #{tpu_custom_call.1} parent=5 // pred_region
      %s168 = ssub.s32 %s11, 1
      %p169 = pneg %p32
      %p170 = pneg %p29
      %p171 = scmp.lt.s32.totalorder %s16, 1
      %s172 = scalar_select %p171, %s16, 1
      %s173 = smul.addr %s172, 32
      %s174 = smul.addr %s173, 8
      %s175 = scalar_lea.vmem %s1, %s174
      %p176 = pneg %p58
      %p177 = pneg %p55
      %p178 = pneg %p79
      %p179 = pneg %p76
      %p180 = pneg %p100
      %p181 = pneg %p97
      %p182 = pneg %p126
      %p183 = pneg %p123
      %p184 = scmp.lt.s32.totalorder %s16, 1
      %s185 = scalar_select %p184, %s16, 1
      %s186 = smul.addr %s185, 32
      %s187 = smul.addr %s186, 8
      %s188 = scalar_lea.vmem %s4, %s187
      %p189 = scmp.lt.s32.totalorder %s16, 1
      %s190 = scalar_select %p189, %s16, 1
      %s191 = smul.addr %s190, 32
      %s192 = smul.addr %s191, 8
      %s193 = scalar_lea.vmem %s1, %s192
      %p194 = scmp.lt.s32.totalorder %s16, 1
      %s195 = scalar_select %p194, %s16, 1
      %s196 = smul.addr %s195, 32
      %s197 = smul.addr %s196, 8
      %s198 = scalar_lea.vmem %s4, %s197
      %s199 = sld [smem:[#allocation2]]
      %v200 = vld [vmem:[%s193] sm:$0xff]
      %v201 = vld [vmem:[%s193 + $0x8] sm:$0xff]
      %v202 = vld [vmem:[%s193 + $0x10] sm:$0xff]
      %v203 = vld [vmem:[%s193 + $0x18] sm:$0xff]
      %v204 = vld [vmem:[%s193 + $0x20] sm:$0xff]
      %v205 = vld [vmem:[%s193 + $0x28] sm:$0xff]
      %v206 = vld [vmem:[%s193 + $0x30] sm:$0xff]
      %v207 = vld [vmem:[%s193 + $0x38] sm:$0xff]
      %v208 = vld [vmem:[%s193 + $0x40] sm:$0xff]
      %v209 = vld [vmem:[%s193 + $0x48] sm:$0xff]
      %v210 = vld [vmem:[%s193 + $0x50] sm:$0xff]
      %v211 = vld [vmem:[%s193 + $0x58] sm:$0xff]
      %v212 = vld [vmem:[%s193 + $0x60] sm:$0xff]
      %v213 = vld [vmem:[%s193 + $0x68] sm:$0xff]
      %v214 = vld [vmem:[%s193 + $0x70] sm:$0xff]
      %v215 = vld [vmem:[%s193 + $0x78] sm:$0xff]
      %v216 = vld [vmem:[%s193 + $0x80] sm:$0xff]
      %v217 = vld [vmem:[%s193 + $0x88] sm:$0xff]
      %v218 = vld [vmem:[%s193 + $0x90] sm:$0xff]
      %v219 = vld [vmem:[%s193 + $0x98] sm:$0xff]
      %v220 = vld [vmem:[%s193 + $0xa0] sm:$0xff]
      %v221 = vld [vmem:[%s193 + $0xa8] sm:$0xff]
      %v222 = vld [vmem:[%s193 + $0xb0] sm:$0xff]
      %v223 = vld [vmem:[%s193 + $0xb8] sm:$0xff]
      %v224 = vld [vmem:[%s193 + $0xc0] sm:$0xff]
      %v225 = vld [vmem:[%s193 + $0xc8] sm:$0xff]
      %v226 = vld [vmem:[%s193 + $0xd0] sm:$0xff]
      %v227 = vld [vmem:[%s193 + $0xd8] sm:$0xff]
      %v228 = vld [vmem:[%s193 + $0xe0] sm:$0xff]
      %v229 = vld [vmem:[%s193 + $0xe8] sm:$0xff]
      %v230 = vld [vmem:[%s193 + $0xf0] sm:$0xff]
      %v231 = vld [vmem:[%s193 + $0xf8] sm:$0xff]
      %v232 = vld [vmem:[%s2] sm:$0xff]
      %v233 = vld [vmem:[%s2 + $0x8] sm:$0xff]
      %v234 = vld [vmem:[%s2 + $0x10] sm:$0xff]
      %v235 = vld [vmem:[%s2 + $0x18] sm:$0xff]
      %v236 = vld [vmem:[%s2 + $0x20] sm:$0xff]
      %v237 = vld [vmem:[%s2 + $0x28] sm:$0xff]
      %v238 = vld [vmem:[%s2 + $0x30] sm:$0xff]
      %v239 = vld [vmem:[%s2 + $0x38] sm:$0xff]
      %v240 = vld [vmem:[%s2 + $0x40] sm:$0xff]
      %vm241 = vcmask 588800
      %v243 = vsel %vm241, %v200, 0
      %v246 = vsel %vm241, %v201, 0
      %v249 = vsel %vm241, %v202, 0
      %v252 = vsel %vm241, %v203, 0
      %v255 = vsel %vm241, %v204, 0
      %v258 = vsel %vm241, %v205, 0
      %v261 = vsel %vm241, %v206, 0
      %v264 = vsel %vm241, %v207, 0
      %v267 = vsel %vm241, %v208, 0
      %v270 = vsel %vm241, %v209, 0
      %v273 = vsel %vm241, %v210, 0
      %v276 = vsel %vm241, %v211, 0
      %v279 = vsel %vm241, %v212, 0
      %v282 = vsel %vm241, %v213, 0
      %v285 = vsel %vm241, %v214, 0
      %v288 = vsel %vm241, %v215, 0
      %v291 = vsel %vm241, %v216, 0
      %v294 = vsel %vm241, %v217, 0
      %v297 = vsel %vm241, %v218, 0
      %v300 = vsel %vm241, %v219, 0
      %v303 = vsel %vm241, %v220, 0
      %v306 = vsel %vm241, %v221, 0
      %v309 = vsel %vm241, %v222, 0
      %v312 = vsel %vm241, %v223, 0
      %v315 = vsel %vm241, %v224, 0
      %v318 = vsel %vm241, %v225, 0
      %v321 = vsel %vm241, %v226, 0
      %v324 = vsel %vm241, %v227, 0
      %v327 = vsel %vm241, %v228, 0
      %v330 = vsel %vm241, %v229, 0
      %v333 = vsel %vm241, %v230, 0
      %v336 = vsel %vm241, %v231, 0
      %338 = vmatpush.msra.mxu0 0.0
      %339 = vmatpush.msra.mxu0 0.0
      %340 = vmatpush.msra.mxu0 0.0
      %341 = vmatpush.msra.mxu0 0.0
      %342 = vmatpush.msra.mxu0 0.0
      %343 = vmatpush.msra.mxu0 0.0
      %344 = vmatpush.msra.mxu0 0.0
      %345 = vmatpush.msra.mxu0 %v240
      %346 = vmatpush.msra.mxu0 %v239
      %347 = vmatpush.msra.mxu0 %v238
      %348 = vmatpush.msra.mxu0 %v237
      %349 = vmatpush.msra.mxu0 %v236
      %350 = vmatpush.msra.mxu0 %v235
      %351 = vmatpush.msra.mxu0 %v234
      %352 = vmatpush.msra.mxu0 %v233
      %353 = vmatpush.msra.mxu0 %v232
      %354 = vmatmul.f32.gmra.mxu0 %v243
      %v355 = vpop.f32.mrf.mxu0
      %v356 = vadd.f32 0.0, %v355
      %357 = vmatmul.f32.gmra.mxu0 %v246
      %v358 = vpop.f32.mrf.mxu0
      %v359 = vadd.f32 0.0, %v358
      %360 = vmatmul.f32.gmra.mxu0 %v249
      %v361 = vpop.f32.mrf.mxu0
      %v362 = vadd.f32 0.0, %v361
      %363 = vmatmul.f32.gmra.mxu0 %v252
      %v364 = vpop.f32.mrf.mxu0
      %v365 = vadd.f32 0.0, %v364
      %366 = vmatmul.f32.gmra.mxu0 %v255
      %v367 = vpop.f32.mrf.mxu0
      %v368 = vadd.f32 0.0, %v367
      %369 = vmatmul.f32.gmra.mxu0 %v258
      %v370 = vpop.f32.mrf.mxu0
      %v371 = vadd.f32 0.0, %v370
      %372 = vmatmul.f32.gmra.mxu0 %v261
      %v373 = vpop.f32.mrf.mxu0
      %v374 = vadd.f32 0.0, %v373
      %375 = vmatmul.f32.gmra.mxu0 %v264
      %v376 = vpop.f32.mrf.mxu0
      %v377 = vadd.f32 0.0, %v376
      %378 = vmatmul.f32.gmra.mxu0 %v267
      %v379 = vpop.f32.mrf.mxu0
      %v380 = vadd.f32 0.0, %v379
      %381 = vmatmul.f32.gmra.mxu0 %v270
      %v382 = vpop.f32.mrf.mxu0
      %v383 = vadd.f32 0.0, %v382
      %384 = vmatmul.f32.gmra.mxu0 %v273
      %v385 = vpop.f32.mrf.mxu0
      %v386 = vadd.f32 0.0, %v385
      %387 = vmatmul.f32.gmra.mxu0 %v276
      %v388 = vpop.f32.mrf.mxu0
      %v389 = vadd.f32 0.0, %v388
      %390 = vmatmul.f32.gmra.mxu0 %v279
      %v391 = vpop.f32.mrf.mxu0
      %v392 = vadd.f32 0.0, %v391
      %393 = vmatmul.f32.gmra.mxu0 %v282
      %v394 = vpop.f32.mrf.mxu0
      %v395 = vadd.f32 0.0, %v394
      %396 = vmatmul.f32.gmra.mxu0 %v285
      %v397 = vpop.f32.mrf.mxu0
      %v398 = vadd.f32 0.0, %v397
      %399 = vmatmul.f32.gmra.mxu0 %v288
      %v400 = vpop.f32.mrf.mxu0
      %v401 = vadd.f32 0.0, %v400
      %402 = vmatmul.f32.gmra.mxu0 %v291
      %v403 = vpop.f32.mrf.mxu0
      %v404 = vadd.f32 0.0, %v403
      %405 = vmatmul.f32.gmra.mxu0 %v294
      %v406 = vpop.f32.mrf.mxu0
      %v407 = vadd.f32 0.0, %v406
      %408 = vmatmul.f32.gmra.mxu0 %v297
      %v409 = vpop.f32.mrf.mxu0
      %v410 = vadd.f32 0.0, %v409
      %411 = vmatmul.f32.gmra.mxu0 %v300
      %v412 = vpop.f32.mrf.mxu0
      %v413 = vadd.f32 0.0, %v412
      %414 = vmatmul.f32.gmra.mxu0 %v303
      %v415 = vpop.f32.mrf.mxu0
      %v416 = vadd.f32 0.0, %v415
      %417 = vmatmul.f32.gmra.mxu0 %v306
      %v418 = vpop.f32.mrf.mxu0
      %v419 = vadd.f32 0.0, %v418
      %420 = vmatmul.f32.gmra.mxu0 %v309
      %v421 = vpop.f32.mrf.mxu0
      %v422 = vadd.f32 0.0, %v421
      %423 = vmatmul.f32.gmra.mxu0 %v312
      %v424 = vpop.f32.mrf.mxu0
      %v425 = vadd.f32 0.0, %v424
      %426 = vmatmul.f32.gmra.mxu0 %v315
      %v427 = vpop.f32.mrf.mxu0
      %v428 = vadd.f32 0.0, %v427
      %429 = vmatmul.f32.gmra.mxu0 %v318
      %v430 = vpop.f32.mrf.mxu0
      %v431 = vadd.f32 0.0, %v430
      %432 = vmatmul.f32.gmra.mxu0 %v321
      %v433 = vpop.f32.mrf.mxu0
      %v434 = vadd.f32 0.0, %v433
      %435 = vmatmul.f32.gmra.mxu0 %v324
      %v436 = vpop.f32.mrf.mxu0
      %v437 = vadd.f32 0.0, %v436
      %438 = vmatmul.f32.gmra.mxu0 %v327
      %v439 = vpop.f32.mrf.mxu0
      %v440 = vadd.f32 0.0, %v439
      %441 = vmatmul.f32.gmra.mxu0 %v330
      %v442 = vpop.f32.mrf.mxu0
      %v443 = vadd.f32 0.0, %v442
      %444 = vmatmul.f32.gmra.mxu0 %v333
      %v445 = vpop.f32.mrf.mxu0
      %v446 = vadd.f32 0.0, %v445
      %447 = vmatmul.f32.gmra.mxu0 %v336
      %v448 = vpop.f32.mrf.mxu0
      %v449 = vadd.f32 0.0, %v448
      %450 = vdwg.mxu0
      %vm451 = vcmp.gt.f32.partialorder %v356, 0.0
      %vm452 = vcmp.gt.f32.partialorder %v359, 0.0
      %vm453 = vcmp.gt.f32.partialorder %v362, 0.0
      %vm454 = vcmp.gt.f32.partialorder %v365, 0.0
      %vm455 = vcmp.gt.f32.partialorder %v368, 0.0
      %vm456 = vcmp.gt.f32.partialorder %v371, 0.0
      %vm457 = vcmp.gt.f32.partialorder %v374, 0.0
      %vm458 = vcmp.gt.f32.partialorder %v377, 0.0
      %vm459 = vcmp.gt.f32.partialorder %v380, 0.0
      %vm460 = vcmp.gt.f32.partialorder %v383, 0.0
      %vm461 = vcmp.gt.f32.partialorder %v386, 0.0
      %vm462 = vcmp.gt.f32.partialorder %v389, 0.0
      %vm463 = vcmp.gt.f32.partialorder %v392, 0.0
      %vm464 = vcmp.gt.f32.partialorder %v395, 0.0
      %vm465 = vcmp.gt.f32.partialorder %v398, 0.0
      %vm466 = vcmp.gt.f32.partialorder %v401, 0.0
      %vm467 = vcmp.gt.f32.partialorder %v404, 0.0
      %vm468 = vcmp.gt.f32.partialorder %v407, 0.0
      %vm469 = vcmp.gt.f32.partialorder %v410, 0.0
      %vm470 = vcmp.gt.f32.partialorder %v413, 0.0
      %vm471 = vcmp.gt.f32.partialorder %v416, 0.0
      %vm472 = vcmp.gt.f32.partialorder %v419, 0.0
      %vm473 = vcmp.gt.f32.partialorder %v422, 0.0
      %vm474 = vcmp.gt.f32.partialorder %v425, 0.0
      %vm475 = vcmp.gt.f32.partialorder %v428, 0.0
      %vm476 = vcmp.gt.f32.partialorder %v431, 0.0
      %vm477 = vcmp.gt.f32.partialorder %v434, 0.0
      %vm478 = vcmp.gt.f32.partialorder %v437, 0.0
      %vm479 = vcmp.gt.f32.partialorder %v440, 0.0
      %vm480 = vcmp.gt.f32.partialorder %v443, 0.0
      %vm481 = vcmp.gt.f32.partialorder %v446, 0.0
      %vm482 = vcmp.gt.f32.partialorder %v449, 0.0
      %v483 = vstv %s199
      %v484 = vmul.f32 %v483, %v356
      %v485 = vmul.f32 %v483, %v359
      %v486 = vmul.f32 %v483, %v362
      %v487 = vmul.f32 %v483, %v365
      %v488 = vmul.f32 %v483, %v368
      %v489 = vmul.f32 %v483, %v371
      %v490 = vmul.f32 %v483, %v374
      %v491 = vmul.f32 %v483, %v377
      %v492 = vmul.f32 %v483, %v380
      %v493 = vmul.f32 %v483, %v383
      %v494 = vmul.f32 %v483, %v386
      %v495 = vmul.f32 %v483, %v389
      %v496 = vmul.f32 %v483, %v392
      %v497 = vmul.f32 %v483, %v395
      %v498 = vmul.f32 %v483, %v398
      %v499 = vmul.f32 %v483, %v401
      %v500 = vmul.f32 %v483, %v404
      %v501 = vmul.f32 %v483, %v407
      %v502 = vmul.f32 %v483, %v410
      %v503 = vmul.f32 %v483, %v413
      %v504 = vmul.f32 %v483, %v416
      %v505 = vmul.f32 %v483, %v419
      %v506 = vmul.f32 %v483, %v422
      %v507 = vmul.f32 %v483, %v425
      %v508 = vmul.f32 %v483, %v428
      %v509 = vmul.f32 %v483, %v431
      %v510 = vmul.f32 %v483, %v434
      %v511 = vmul.f32 %v483, %v437
      %v512 = vmul.f32 %v483, %v440
      %v513 = vmul.f32 %v483, %v443
      %v514 = vmul.f32 %v483, %v446
      %v515 = vmul.f32 %v483, %v449
      %v516 = vsel %vm451, %v356, %v484
      %v517 = vsel %vm452, %v359, %v485
      %v518 = vsel %vm453, %v362, %v486
      %v519 = vsel %vm454, %v365, %v487
      %v520 = vsel %vm455, %v368, %v488
      %v521 = vsel %vm456, %v371, %v489
      %v522 = vsel %vm457, %v374, %v490
      %v523 = vsel %vm458, %v377, %v491
      %v524 = vsel %vm459, %v380, %v492
      %v525 = vsel %vm460, %v383, %v493
      %v526 = vsel %vm461, %v386, %v494
      %v527 = vsel %vm462, %v389, %v495
      %v528 = vsel %vm463, %v392, %v496
      %v529 = vsel %vm464, %v395, %v497
      %v530 = vsel %vm465, %v398, %v498
      %v531 = vsel %vm466, %v401, %v499
      %v532 = vsel %vm467, %v404, %v500
      %v533 = vsel %vm468, %v407, %v501
      %v534 = vsel %vm469, %v410, %v502
      %v535 = vsel %vm470, %v413, %v503
      %v536 = vsel %vm471, %v416, %v504
      %v537 = vsel %vm472, %v419, %v505
      %v538 = vsel %vm473, %v422, %v506
      %v539 = vsel %vm474, %v425, %v507
      %v540 = vsel %vm475, %v428, %v508
      %v541 = vsel %vm476, %v431, %v509
      %v542 = vsel %vm477, %v434, %v510
      %v543 = vsel %vm478, %v437, %v511
      %v544 = vsel %vm479, %v440, %v512
      %v545 = vsel %vm480, %v443, %v513
      %v546 = vsel %vm481, %v446, %v514
      %v547 = vsel %vm482, %v449, %v515
      %v564 = vrot.slane %v516, 1
      %v565 = vrot.slane %v518, 1
      %v566 = vrot.slane %v520, 1
      %v567 = vrot.slane %v522, 1
      %v568 = vrot.slane %v524, 1
      %v569 = vrot.slane %v526, 1
      %v570 = vrot.slane %v528, 1
      %v571 = vrot.slane %v530, 1
      %v572 = vrot.slane %v532, 1
      %v573 = vrot.slane %v534, 1
      %v574 = vrot.slane %v536, 1
      %v575 = vrot.slane %v538, 1
      %v576 = vrot.slane %v540, 1
      %v577 = vrot.slane %v542, 1
      %v578 = vrot.slane %v544, 1
      %v579 = vrot.slane %v546, 1
      %vm612 = vcmask 1040384
      %v613 = vrot.slane %v516, 7
      %v614 = vrot.slane %v517, 7
      %v615 = vsel %vm612, %v613, %v614
      %v616 = vrot.slane %v518, 7
      %v617 = vrot.slane %v519, 7
      %v618 = vsel %vm612, %v616, %v617
      %v619 = vrot.slane %v520, 7
      %v620 = vrot.slane %v521, 7
      %v621 = vsel %vm612, %v619, %v620
      %v622 = vrot.slane %v522, 7
      %v623 = vrot.slane %v523, 7
      %v624 = vsel %vm612, %v622, %v623
      %v625 = vrot.slane %v524, 7
      %v626 = vrot.slane %v525, 7
      %v627 = vsel %vm612, %v625, %v626
      %v628 = vrot.slane %v526, 7
      %v629 = vrot.slane %v527, 7
      %v630 = vsel %vm612, %v628, %v629
      %v631 = vrot.slane %v528, 7
      %v632 = vrot.slane %v529, 7
      %v633 = vsel %vm612, %v631, %v632
      %v634 = vrot.slane %v530, 7
      %v635 = vrot.slane %v531, 7
      %v636 = vsel %vm612, %v634, %v635
      %v637 = vrot.slane %v532, 7
      %v638 = vrot.slane %v533, 7
      %v639 = vsel %vm612, %v637, %v638
      %v640 = vrot.slane %v534, 7
      %v641 = vrot.slane %v535, 7
      %v642 = vsel %vm612, %v640, %v641
      %v643 = vrot.slane %v536, 7
      %v644 = vrot.slane %v537, 7
      %v645 = vsel %vm612, %v643, %v644
      %v646 = vrot.slane %v538, 7
      %v647 = vrot.slane %v539, 7
      %v648 = vsel %vm612, %v646, %v647
      %v649 = vrot.slane %v540, 7
      %v650 = vrot.slane %v541, 7
      %v651 = vsel %vm612, %v649, %v650
      %v652 = vrot.slane %v542, 7
      %v653 = vrot.slane %v543, 7
      %v654 = vsel %vm612, %v652, %v653
      %v655 = vrot.slane %v544, 7
      %v656 = vrot.slane %v545, 7
      %v657 = vsel %vm612, %v655, %v656
      %v658 = vrot.slane %v546, 7
      %v659 = vrot.slane %v547, 7
      %v660 = vsel %vm612, %v658, %v659
      %v677 = vsel %vm612, %v564, %v613
      %v678 = vsel %vm612, %v565, %v616
      %v679 = vsel %vm612, %v566, %v619
      %v680 = vsel %vm612, %v567, %v622
      %v681 = vsel %vm612, %v568, %v625
      %v682 = vsel %vm612, %v569, %v628
      %v683 = vsel %vm612, %v570, %v631
      %v684 = vsel %vm612, %v571, %v634
      %v685 = vsel %vm612, %v572, %v637
      %v686 = vsel %vm612, %v573, %v640
      %v687 = vsel %vm612, %v574, %v643
      %v688 = vsel %vm612, %v575, %v646
      %v689 = vsel %vm612, %v576, %v649
      %v690 = vsel %vm612, %v577, %v652
      %v691 = vsel %vm612, %v578, %v655
      %v692 = vsel %vm612, %v579, %v658
      %vm693 = vcmask 1046528
      %v694 = vrot.slane %v517, 1
      %v695 = vsel %vm693, %v564, %v694
      %v696 = vrot.slane %v519, 1
      %v697 = vsel %vm693, %v565, %v696
      %v698 = vrot.slane %v521, 1
      %v699 = vsel %vm693, %v566, %v698
      %v700 = vrot.slane %v523, 1
      %v701 = vsel %vm693, %v567, %v700
      %v702 = vrot.slane %v525, 1
      %v703 = vsel %vm693, %v568, %v702
      %v704 = vrot.slane %v527, 1
      %v705 = vsel %vm693, %v569, %v704
      %v706 = vrot.slane %v529, 1
      %v707 = vsel %vm693, %v570, %v706
      %v708 = vrot.slane %v531, 1
      %v709 = vsel %vm693, %v571, %v708
      %v710 = vrot.slane %v533, 1
      %v711 = vsel %vm693, %v572, %v710
      %v712 = vrot.slane %v535, 1
      %v713 = vsel %vm693, %v573, %v712
      %v714 = vrot.slane %v537, 1
      %v715 = vsel %vm693, %v574, %v714
      %v716 = vrot.slane %v539, 1
      %v717 = vsel %vm693, %v575, %v716
      %v718 = vrot.slane %v541, 1
      %v719 = vsel %vm693, %v576, %v718
      %v720 = vrot.slane %v543, 1
      %v721 = vsel %vm693, %v577, %v720
      %v722 = vrot.slane %v545, 1
      %v723 = vsel %vm693, %v578, %v722
      %v724 = vrot.slane %v547, 1
      %v725 = vsel %vm693, %v579, %v724
      %v758 = vsel %vm693, %v694, %v614
      %v759 = vsel %vm693, %v696, %v617
      %v760 = vsel %vm693, %v698, %v620
      %v761 = vsel %vm693, %v700, %v623
      %v762 = vsel %vm693, %v702, %v626
      %v763 = vsel %vm693, %v704, %v629
      %v764 = vsel %vm693, %v706, %v632
      %v765 = vsel %vm693, %v708, %v635
      %v766 = vsel %vm693, %v710, %v638
      %v767 = vsel %vm693, %v712, %v641
      %v768 = vsel %vm693, %v714, %v644
      %v769 = vsel %vm693, %v716, %v647
      %v770 = vsel %vm693, %v718, %v650
      %v771 = vsel %vm693, %v720, %v653
      %v772 = vsel %vm693, %v722, %v656
      %v773 = vsel %vm693, %v724, %v659
      %v774 = vld [vmem:[%s3] sm:$0xff]
      %v775 = vld [vmem:[%s3 + $0x8] sm:$0xff]
      %v776 = vld [vmem:[%s3 + $0x10] sm:$0xff]
      %v777 = vld [vmem:[%s3 + $0x18] sm:$0xff]
      %s778 = scalar_lea.vmem %s3, 32
      %v779 = vld [vmem:[%s778] sm:$0xff]
      %v780 = vld [vmem:[%s778 + $0x8] sm:$0xff]
      %v781 = vld [vmem:[%s778 + $0x10] sm:$0xff]
      %v782 = vld [vmem:[%s778 + $0x18] sm:$0xff]
      %vm783 = vcmask 261120
      %v784 = vsel %vm783, %v518, 0
      %v786 = vsel %vm783, %v519, 0
      %v788 = vsel %vm783, %v516, 0
      %v790 = vsel %vm783, %v517, 0
      %v792 = vsel %vm783, %v520, 0
      %v794 = vsel %vm783, %v521, 0
      %v796 = vsel %vm783, %v522, 0
      %v798 = vsel %vm783, %v523, 0
      %v800 = vsel %vm783, %v524, 0
      %v802 = vsel %vm783, %v525, 0
      %v804 = vsel %vm783, %v526, 0
      %v806 = vsel %vm783, %v527, 0
      %v808 = vsel %vm783, %v528, 0
      %v810 = vsel %vm783, %v529, 0
      %v812 = vsel %vm783, %v530, 0
      %v814 = vsel %vm783, %v531, 0
      %v816 = vsel %vm783, %v532, 0
      %v818 = vsel %vm783, %v533, 0
      %v820 = vsel %vm783, %v534, 0
      %v822 = vsel %vm783, %v535, 0
      %v824 = vsel %vm783, %v536, 0
      %v826 = vsel %vm783, %v537, 0
      %v828 = vsel %vm783, %v538, 0
      %v830 = vsel %vm783, %v539, 0
      %v832 = vsel %vm783, %v540, 0
      %v834 = vsel %vm783, %v541, 0
      %v836 = vsel %vm783, %v542, 0
      %v838 = vsel %vm783, %v543, 0
      %v840 = vsel %vm783, %v544, 0
      %v842 = vsel %vm783, %v545, 0
      %844 = vmatpush.msra.mxu0 0.0
      %845 = vmatpush.msra.mxu0 0.0
      %846 = vmatpush.msra.mxu0 0.0
      %847 = vmatpush.msra.mxu0 0.0
      %848 = vmatpush.msra.mxu0 0.0
      %849 = vmatpush.msra.mxu0 0.0
      %850 = vmatpush.msra.mxu0 0.0
      %851 = vmatpush.msra.mxu0 0.0
      %852 = vmatpush.msra.mxu0 0.0
      %853 = vmatpush.msra.mxu0 0.0
      %854 = vmatpush.msra.mxu0 0.0
      %855 = vmatpush.msra.mxu0 0.0
      %856 = vmatpush.msra.mxu0 %v782
      %857 = vmatpush.msra.mxu0 %v781
      %858 = vmatpush.msra.mxu0 %v780
      %859 = vmatpush.msra.mxu0 %v779
      %860 = vmatmul.f32.gmra.mxu0 %v784
      %v861 = vpop.f32.mrf.mxu0
      %v862 = vadd.f32 0.0, %v861
      %863 = vmatmul.f32.gmra.mxu0 %v786
      %v864 = vpop.f32.mrf.mxu0
      %v865 = vadd.f32 0.0, %v864
      %866 = vmatmul.f32.gmra.mxu0 %v788
      %v867 = vpop.f32.mrf.mxu0
      %v868 = vadd.f32 0.0, %v867
      %869 = vmatmul.f32.gmra.mxu0 %v790
      %v870 = vpop.f32.mrf.mxu0
      %v871 = vadd.f32 0.0, %v870
      %872 = vmatmul.f32.gmra.mxu0 %v784
      %v873 = vpop.f32.mrf.mxu0
      %v874 = vadd.f32 0.0, %v873
      %875 = vmatmul.f32.gmra.mxu0 %v786
      %v876 = vpop.f32.mrf.mxu0
      %v877 = vadd.f32 0.0, %v876
      %878 = vmatmul.f32.gmra.mxu0 %v792
      %v879 = vpop.f32.mrf.mxu0
      %v880 = vadd.f32 0.0, %v879
      %881 = vmatmul.f32.gmra.mxu0 %v794
      %v882 = vpop.f32.mrf.mxu0
      %v883 = vadd.f32 0.0, %v882
      %884 = vmatmul.f32.gmra.mxu0 %v796
      %v885 = vpop.f32.mrf.mxu0
      %v886 = vadd.f32 0.0, %v885
      %887 = vmatmul.f32.gmra.mxu0 %v798
      %v888 = vpop.f32.mrf.mxu0
      %v889 = vadd.f32 0.0, %v888
      %890 = vmatmul.f32.gmra.mxu0 %v800
      %v891 = vpop.f32.mrf.mxu0
      %v892 = vadd.f32 0.0, %v891
      %893 = vmatmul.f32.gmra.mxu0 %v802
      %v894 = vpop.f32.mrf.mxu0
      %v895 = vadd.f32 0.0, %v894
      %896 = vmatmul.f32.gmra.mxu0 %v804
      %v897 = vpop.f32.mrf.mxu0
      %v898 = vadd.f32 0.0, %v897
      %899 = vmatmul.f32.gmra.mxu0 %v806
      %v900 = vpop.f32.mrf.mxu0
      %v901 = vadd.f32 0.0, %v900
      %902 = vmatmul.f32.gmra.mxu0 %v808
      %v903 = vpop.f32.mrf.mxu0
      %v904 = vadd.f32 0.0, %v903
      %905 = vmatmul.f32.gmra.mxu0 %v810
      %v906 = vpop.f32.mrf.mxu0
      %v907 = vadd.f32 0.0, %v906
      %908 = vmatmul.f32.gmra.mxu0 %v812
      %v909 = vpop.f32.mrf.mxu0
      %v910 = vadd.f32 0.0, %v909
      %911 = vmatmul.f32.gmra.mxu0 %v814
      %v912 = vpop.f32.mrf.mxu0
      %v913 = vadd.f32 0.0, %v912
      %914 = vmatmul.f32.gmra.mxu0 %v816
      %v915 = vpop.f32.mrf.mxu0
      %v916 = vadd.f32 0.0, %v915
      %917 = vmatmul.f32.gmra.mxu0 %v818
      %v918 = vpop.f32.mrf.mxu0
      %v919 = vadd.f32 0.0, %v918
      %920 = vmatmul.f32.gmra.mxu0 %v820
      %v921 = vpop.f32.mrf.mxu0
      %v922 = vadd.f32 0.0, %v921
      %923 = vmatmul.f32.gmra.mxu0 %v822
      %v924 = vpop.f32.mrf.mxu0
      %v925 = vadd.f32 0.0, %v924
      %926 = vmatmul.f32.gmra.mxu0 %v824
      %v927 = vpop.f32.mrf.mxu0
      %v928 = vadd.f32 0.0, %v927
      %929 = vmatmul.f32.gmra.mxu0 %v826
      %v930 = vpop.f32.mrf.mxu0
      %v931 = vadd.f32 0.0, %v930
      %932 = vmatmul.f32.gmra.mxu0 %v828
      %v933 = vpop.f32.mrf.mxu0
      %v934 = vadd.f32 0.0, %v933
      %935 = vmatmul.f32.gmra.mxu0 %v830
      %v936 = vpop.f32.mrf.mxu0
      %v937 = vadd.f32 0.0, %v936
      %938 = vmatmul.f32.gmra.mxu0 %v832
      %v939 = vpop.f32.mrf.mxu0
      %v940 = vadd.f32 0.0, %v939
      %941 = vmatmul.f32.gmra.mxu0 %v834
      %v942 = vpop.f32.mrf.mxu0
      %v943 = vadd.f32 0.0, %v942
      %944 = vmatmul.f32.gmra.mxu0 %v836
      %v945 = vpop.f32.mrf.mxu0
      %v946 = vadd.f32 0.0, %v945
      %947 = vmatmul.f32.gmra.mxu0 %v838
      %v948 = vpop.f32.mrf.mxu0
      %v949 = vadd.f32 0.0, %v948
      %950 = vmatmul.f32.gmra.mxu0 %v840
      %v951 = vpop.f32.mrf.mxu0
      %v952 = vadd.f32 0.0, %v951
      %953 = vmatmul.f32.gmra.mxu0 %v842
      %v954 = vpop.f32.mrf.mxu0
      %v955 = vadd.f32 0.0, %v954
      %956 = vdwg.mxu0
      %v958 = vsel %vm783, %v678, 0
      %v960 = vsel %vm783, %v618, 0
      %v963 = vsel %vm783, %v677, 0
      %v965 = vsel %vm783, %v615, 0
      %v968 = vsel %vm783, %v679, 0
      %v970 = vsel %vm783, %v621, 0
      %v973 = vsel %vm783, %v680, 0
      %v975 = vsel %vm783, %v624, 0
      %v978 = vsel %vm783, %v681, 0
      %v980 = vsel %vm783, %v627, 0
      %v983 = vsel %vm783, %v682, 0
      %v985 = vsel %vm783, %v630, 0
      %v988 = vsel %vm783, %v683, 0
      %v990 = vsel %vm783, %v633, 0
      %v993 = vsel %vm783, %v684, 0
      %v995 = vsel %vm783, %v636, 0
      %v998 = vsel %vm783, %v685, 0
      %v1000 = vsel %vm783, %v639, 0
      %v1003 = vsel %vm783, %v686, 0
      %v1005 = vsel %vm783, %v642, 0
      %v1008 = vsel %vm783, %v687, 0
      %v1010 = vsel %vm783, %v645, 0
      %v1013 = vsel %vm783, %v688, 0
      %v1015 = vsel %vm783, %v648, 0
      %v1018 = vsel %vm783, %v689, 0
      %v1020 = vsel %vm783, %v651, 0
      %v1023 = vsel %vm783, %v690, 0
      %v1025 = vsel %vm783, %v654, 0
      %v1028 = vsel %vm783, %v691, 0
      %v1030 = vsel %vm783, %v657, 0
      %1032 = vmatpush.msra.mxu0 0.0
      %1033 = vmatpush.msra.mxu0 0.0
      %1034 = vmatpush.msra.mxu0 0.0
      %1035 = vmatpush.msra.mxu0 0.0
      %1036 = vmatpush.msra.mxu0 0.0
      %1037 = vmatpush.msra.mxu0 0.0
      %1038 = vmatpush.msra.mxu0 0.0
      %1039 = vmatpush.msra.mxu0 0.0
      %1040 = vmatpush.msra.mxu0 0.0
      %1041 = vmatpush.msra.mxu0 0.0
      %1042 = vmatpush.msra.mxu0 0.0
      %1043 = vmatpush.msra.mxu0 0.0
      %1044 = vmatpush.msra.mxu0 %v777
      %1045 = vmatpush.msra.mxu0 %v776
      %1046 = vmatpush.msra.mxu0 %v775
      %1047 = vmatpush.msra.mxu0 %v774
      %1048 = vmatmul.f32.gmra.mxu0 %v958
      %v1049 = vpop.f32.mrf.mxu0
      %v1050 = vadd.f32 %v862, %v1049
      %1051 = vmatmul.f32.gmra.mxu0 %v960
      %v1052 = vpop.f32.mrf.mxu0
      %v1053 = vadd.f32 %v865, %v1052
      %1054 = vmatmul.f32.gmra.mxu0 %v963
      %v1055 = vpop.f32.mrf.mxu0
      %v1056 = vadd.f32 %v868, %v1055
      %1057 = vmatmul.f32.gmra.mxu0 %v965
      %v1058 = vpop.f32.mrf.mxu0
      %v1059 = vadd.f32 %v871, %v1058
      %1060 = vmatmul.f32.gmra.mxu0 %v958
      %v1061 = vpop.f32.mrf.mxu0
      %v1062 = vadd.f32 %v874, %v1061
      %1063 = vmatmul.f32.gmra.mxu0 %v960
      %v1064 = vpop.f32.mrf.mxu0
      %v1065 = vadd.f32 %v877, %v1064
      %1066 = vmatmul.f32.gmra.mxu0 %v968
      %v1067 = vpop.f32.mrf.mxu0
      %v1068 = vadd.f32 %v880, %v1067
      %1069 = vmatmul.f32.gmra.mxu0 %v970
      %v1070 = vpop.f32.mrf.mxu0
      %v1071 = vadd.f32 %v883, %v1070
      %1072 = vmatmul.f32.gmra.mxu0 %v973
      %v1073 = vpop.f32.mrf.mxu0
      %v1074 = vadd.f32 %v886, %v1073
      %1075 = vmatmul.f32.gmra.mxu0 %v975
      %v1076 = vpop.f32.mrf.mxu0
      %v1077 = vadd.f32 %v889, %v1076
      %1078 = vmatmul.f32.gmra.mxu0 %v978
      %v1079 = vpop.f32.mrf.mxu0
      %v1080 = vadd.f32 %v892, %v1079
      %1081 = vmatmul.f32.gmra.mxu0 %v980
      %v1082 = vpop.f32.mrf.mxu0
      %v1083 = vadd.f32 %v895, %v1082
      %1084 = vmatmul.f32.gmra.mxu0 %v983
      %v1085 = vpop.f32.mrf.mxu0
      %v1086 = vadd.f32 %v898, %v1085
      %1087 = vmatmul.f32.gmra.mxu0 %v985
      %v1088 = vpop.f32.mrf.mxu0
      %v1089 = vadd.f32 %v901, %v1088
      %1090 = vmatmul.f32.gmra.mxu0 %v988
      %v1091 = vpop.f32.mrf.mxu0
      %v1092 = vadd.f32 %v904, %v1091
      %1093 = vmatmul.f32.gmra.mxu0 %v990
      %v1094 = vpop.f32.mrf.mxu0
      %v1095 = vadd.f32 %v907, %v1094
      %1096 = vmatmul.f32.gmra.mxu0 %v993
      %v1097 = vpop.f32.mrf.mxu0
      %v1098 = vadd.f32 %v910, %v1097
      %1099 = vmatmul.f32.gmra.mxu0 %v995
      %v1100 = vpop.f32.mrf.mxu0
      %v1101 = vadd.f32 %v913, %v1100
      %1102 = vmatmul.f32.gmra.mxu0 %v998
      %v1103 = vpop.f32.mrf.mxu0
      %v1104 = vadd.f32 %v916, %v1103
      %1105 = vmatmul.f32.gmra.mxu0 %v1000
      %v1106 = vpop.f32.mrf.mxu0
      %v1107 = vadd.f32 %v919, %v1106
      %1108 = vmatmul.f32.gmra.mxu0 %v1003
      %v1109 = vpop.f32.mrf.mxu0
      %v1110 = vadd.f32 %v922, %v1109
      %1111 = vmatmul.f32.gmra.mxu0 %v1005
      %v1112 = vpop.f32.mrf.mxu0
      %v1113 = vadd.f32 %v925, %v1112
      %1114 = vmatmul.f32.gmra.mxu0 %v1008
      %v1115 = vpop.f32.mrf.mxu0
      %v1116 = vadd.f32 %v928, %v1115
      %1117 = vmatmul.f32.gmra.mxu0 %v1010
      %v1118 = vpop.f32.mrf.mxu0
      %v1119 = vadd.f32 %v931, %v1118
      %1120 = vmatmul.f32.gmra.mxu0 %v1013
      %v1121 = vpop.f32.mrf.mxu0
      %v1122 = vadd.f32 %v934, %v1121
      %1123 = vmatmul.f32.gmra.mxu0 %v1015
      %v1124 = vpop.f32.mrf.mxu0
      %v1125 = vadd.f32 %v937, %v1124
      %1126 = vmatmul.f32.gmra.mxu0 %v1018
      %v1127 = vpop.f32.mrf.mxu0
      %v1128 = vadd.f32 %v940, %v1127
      %1129 = vmatmul.f32.gmra.mxu0 %v1020
      %v1130 = vpop.f32.mrf.mxu0
      %v1131 = vadd.f32 %v943, %v1130
      %1132 = vmatmul.f32.gmra.mxu0 %v1023
      %v1133 = vpop.f32.mrf.mxu0
      %v1134 = vadd.f32 %v946, %v1133
      %1135 = vmatmul.f32.gmra.mxu0 %v1025
      %v1136 = vpop.f32.mrf.mxu0
      %v1137 = vadd.f32 %v949, %v1136
      %1138 = vmatmul.f32.gmra.mxu0 %v1028
      %v1139 = vpop.f32.mrf.mxu0
      %v1140 = vadd.f32 %v952, %v1139
      %1141 = vmatmul.f32.gmra.mxu0 %v1030
      %v1142 = vpop.f32.mrf.mxu0
      %v1143 = vadd.f32 %v955, %v1142
      %1144 = vdwg.mxu0
      %s1145 = scalar_lea.vmem %s3, 64
      %v1146 = vld [vmem:[%s1145] sm:$0xff]
      %v1147 = vld [vmem:[%s1145 + $0x8] sm:$0xff]
      %v1148 = vld [vmem:[%s1145 + $0x10] sm:$0xff]
      %v1149 = vld [vmem:[%s1145 + $0x18] sm:$0xff]
      %v1150 = vsel %vm783, %v697, 0
      %v1153 = vsel %vm783, %v759, 0
      %v1155 = vsel %vm783, %v695, 0
      %v1158 = vsel %vm783, %v758, 0
      %v1160 = vsel %vm783, %v699, 0
      %v1163 = vsel %vm783, %v760, 0
      %v1165 = vsel %vm783, %v701, 0
      %v1168 = vsel %vm783, %v761, 0
      %v1170 = vsel %vm783, %v703, 0
      %v1173 = vsel %vm783, %v762, 0
      %v1175 = vsel %vm783, %v705, 0
      %v1178 = vsel %vm783, %v763, 0
      %v1180 = vsel %vm783, %v707, 0
      %v1183 = vsel %vm783, %v764, 0
      %v1185 = vsel %vm783, %v709, 0
      %v1188 = vsel %vm783, %v765, 0
      %v1190 = vsel %vm783, %v711, 0
      %v1193 = vsel %vm783, %v766, 0
      %v1195 = vsel %vm783, %v713, 0
      %v1198 = vsel %vm783, %v767, 0
      %v1200 = vsel %vm783, %v715, 0
      %v1203 = vsel %vm783, %v768, 0
      %v1205 = vsel %vm783, %v717, 0
      %v1208 = vsel %vm783, %v769, 0
      %v1210 = vsel %vm783, %v719, 0
      %v1213 = vsel %vm783, %v770, 0
      %v1215 = vsel %vm783, %v721, 0
      %v1218 = vsel %vm783, %v771, 0
      %v1220 = vsel %vm783, %v723, 0
      %v1223 = vsel %vm783, %v772, 0
      %1225 = vmatpush.msra.mxu0 0.0
      %1226 = vmatpush.msra.mxu0 0.0
      %1227 = vmatpush.msra.mxu0 0.0
      %1228 = vmatpush.msra.mxu0 0.0
      %1229 = vmatpush.msra.mxu0 0.0
      %1230 = vmatpush.msra.mxu0 0.0
      %1231 = vmatpush.msra.mxu0 0.0
      %1232 = vmatpush.msra.mxu0 0.0
      %1233 = vmatpush.msra.mxu0 0.0
      %1234 = vmatpush.msra.mxu0 0.0
      %1235 = vmatpush.msra.mxu0 0.0
      %1236 = vmatpush.msra.mxu0 0.0
      %1237 = vmatpush.msra.mxu0 %v1149
      %1238 = vmatpush.msra.mxu0 %v1148
      %1239 = vmatpush.msra.mxu0 %v1147
      %1240 = vmatpush.msra.mxu0 %v1146
      %1241 = vmatmul.f32.gmra.mxu0 %v1150
      %v1242 = vpop.f32.mrf.mxu0
      %v1243 = vadd.f32 0.0, %v1242
      %1244 = vmatmul.f32.gmra.mxu0 %v1153
      %v1245 = vpop.f32.mrf.mxu0
      %v1246 = vadd.f32 0.0, %v1245
      %1247 = vmatmul.f32.gmra.mxu0 %v1155
      %v1248 = vpop.f32.mrf.mxu0
      %v1249 = vadd.f32 0.0, %v1248
      %1250 = vmatmul.f32.gmra.mxu0 %v1158
      %v1251 = vpop.f32.mrf.mxu0
      %v1252 = vadd.f32 0.0, %v1251
      %1253 = vmatmul.f32.gmra.mxu0 %v1150
      %v1254 = vpop.f32.mrf.mxu0
      %v1255 = vadd.f32 0.0, %v1254
      %1256 = vmatmul.f32.gmra.mxu0 %v1153
      %v1257 = vpop.f32.mrf.mxu0
      %v1258 = vadd.f32 0.0, %v1257
      %1259 = vmatmul.f32.gmra.mxu0 %v1160
      %v1260 = vpop.f32.mrf.mxu0
      %v1261 = vadd.f32 0.0, %v1260
      %1262 = vmatmul.f32.gmra.mxu0 %v1163
      %v1263 = vpop.f32.mrf.mxu0
      %v1264 = vadd.f32 0.0, %v1263
      %1265 = vmatmul.f32.gmra.mxu0 %v1165
      %v1266 = vpop.f32.mrf.mxu0
      %v1267 = vadd.f32 0.0, %v1266
      %1268 = vmatmul.f32.gmra.mxu0 %v1168
      %v1269 = vpop.f32.mrf.mxu0
      %v1270 = vadd.f32 0.0, %v1269
      %1271 = vmatmul.f32.gmra.mxu0 %v1170
      %v1272 = vpop.f32.mrf.mxu0
      %v1273 = vadd.f32 0.0, %v1272
      %1274 = vmatmul.f32.gmra.mxu0 %v1173
      %v1275 = vpop.f32.mrf.mxu0
      %v1276 = vadd.f32 0.0, %v1275
      %1277 = vmatmul.f32.gmra.mxu0 %v1175
      %v1278 = vpop.f32.mrf.mxu0
      %v1279 = vadd.f32 0.0, %v1278
      %1280 = vmatmul.f32.gmra.mxu0 %v1178
      %v1281 = vpop.f32.mrf.mxu0
      %v1282 = vadd.f32 0.0, %v1281
      %1283 = vmatmul.f32.gmra.mxu0 %v1180
      %v1284 = vpop.f32.mrf.mxu0
      %v1285 = vadd.f32 0.0, %v1284
      %1286 = vmatmul.f32.gmra.mxu0 %v1183
      %v1287 = vpop.f32.mrf.mxu0
      %v1288 = vadd.f32 0.0, %v1287
      %1289 = vmatmul.f32.gmra.mxu0 %v1185
      %v1290 = vpop.f32.mrf.mxu0
      %v1291 = vadd.f32 0.0, %v1290
      %1292 = vmatmul.f32.gmra.mxu0 %v1188
      %v1293 = vpop.f32.mrf.mxu0
      %v1294 = vadd.f32 0.0, %v1293
      %1295 = vmatmul.f32.gmra.mxu0 %v1190
      %v1296 = vpop.f32.mrf.mxu0
      %v1297 = vadd.f32 0.0, %v1296
      %1298 = vmatmul.f32.gmra.mxu0 %v1193
      %v1299 = vpop.f32.mrf.mxu0
      %v1300 = vadd.f32 0.0, %v1299
      %1301 = vmatmul.f32.gmra.mxu0 %v1195
      %v1302 = vpop.f32.mrf.mxu0
      %v1303 = vadd.f32 0.0, %v1302
      %1304 = vmatmul.f32.gmra.mxu0 %v1198
      %v1305 = vpop.f32.mrf.mxu0
      %v1306 = vadd.f32 0.0, %v1305
      %1307 = vmatmul.f32.gmra.mxu0 %v1200
      %v1308 = vpop.f32.mrf.mxu0
      %v1309 = vadd.f32 0.0, %v1308
      %1310 = vmatmul.f32.gmra.mxu0 %v1203
      %v1311 = vpop.f32.mrf.mxu0
      %v1312 = vadd.f32 0.0, %v1311
      %1313 = vmatmul.f32.gmra.mxu0 %v1205
      %v1314 = vpop.f32.mrf.mxu0
      %v1315 = vadd.f32 0.0, %v1314
      %1316 = vmatmul.f32.gmra.mxu0 %v1208
      %v1317 = vpop.f32.mrf.mxu0
      %v1318 = vadd.f32 0.0, %v1317
      %1319 = vmatmul.f32.gmra.mxu0 %v1210
      %v1320 = vpop.f32.mrf.mxu0
      %v1321 = vadd.f32 0.0, %v1320
      %1322 = vmatmul.f32.gmra.mxu0 %v1213
      %v1323 = vpop.f32.mrf.mxu0
      %v1324 = vadd.f32 0.0, %v1323
      %1325 = vmatmul.f32.gmra.mxu0 %v1215
      %v1326 = vpop.f32.mrf.mxu0
      %v1327 = vadd.f32 0.0, %v1326
      %1328 = vmatmul.f32.gmra.mxu0 %v1218
      %v1329 = vpop.f32.mrf.mxu0
      %v1330 = vadd.f32 0.0, %v1329
      %1331 = vmatmul.f32.gmra.mxu0 %v1220
      %v1332 = vpop.f32.mrf.mxu0
      %v1333 = vadd.f32 0.0, %v1332
      %1334 = vmatmul.f32.gmra.mxu0 %v1223
      %v1335 = vpop.f32.mrf.mxu0
      %v1336 = vadd.f32 0.0, %v1335
      %1337 = vdwg.mxu0
      %v1338 = vadd.f32 %v1050, %v1243
      %v1339 = vadd.f32 %v1053, %v1246
      %v1340 = vadd.f32 %v1056, %v1249
      %v1341 = vadd.f32 %v1059, %v1252
      %v1342 = vadd.f32 %v1062, %v1255
      %v1343 = vadd.f32 %v1065, %v1258
      %v1344 = vadd.f32 %v1068, %v1261
      %v1345 = vadd.f32 %v1071, %v1264
      %v1346 = vadd.f32 %v1074, %v1267
      %v1347 = vadd.f32 %v1077, %v1270
      %v1348 = vadd.f32 %v1080, %v1273
      %v1349 = vadd.f32 %v1083, %v1276
      %v1350 = vadd.f32 %v1086, %v1279
      %v1351 = vadd.f32 %v1089, %v1282
      %v1352 = vadd.f32 %v1092, %v1285
      %v1353 = vadd.f32 %v1095, %v1288
      %v1354 = vadd.f32 %v1098, %v1291
      %v1355 = vadd.f32 %v1101, %v1294
      %v1356 = vadd.f32 %v1104, %v1297
      %v1357 = vadd.f32 %v1107, %v1300
      %v1358 = vadd.f32 %v1110, %v1303
      %v1359 = vadd.f32 %v1113, %v1306
      %v1360 = vadd.f32 %v1116, %v1309
      %v1361 = vadd.f32 %v1119, %v1312
      %v1362 = vadd.f32 %v1122, %v1315
      %v1363 = vadd.f32 %v1125, %v1318
      %v1364 = vadd.f32 %v1128, %v1321
      %v1365 = vadd.f32 %v1131, %v1324
      %v1366 = vadd.f32 %v1134, %v1327
      %v1367 = vadd.f32 %v1137, %v1330
      %v1368 = vadd.f32 %v1140, %v1333
      %v1369 = vadd.f32 %v1143, %v1336
      %s1370 = scalar_lea.vmem %s3, 96
      %v1371 = vld [vmem:[%s1370] sm:$0xff]
      %v1372 = vld [vmem:[%s1370 + $0x8] sm:$0xff]
      %v1373 = vld [vmem:[%s1370 + $0x10] sm:$0xff]
      %v1374 = vld [vmem:[%s1370 + $0x18] sm:$0xff]
      %v1376 = vsel %vm783, %v692, 0
      %v1378 = vsel %vm783, %v660, 0
      %1380 = vmatpush.msra.mxu0 0.0
      %1381 = vmatpush.msra.mxu0 0.0
      %1382 = vmatpush.msra.mxu0 0.0
      %1383 = vmatpush.msra.mxu0 0.0
      %1384 = vmatpush.msra.mxu0 0.0
      %1385 = vmatpush.msra.mxu0 0.0
      %1386 = vmatpush.msra.mxu0 0.0
      %1387 = vmatpush.msra.mxu0 0.0
      %1388 = vmatpush.msra.mxu0 0.0
      %1389 = vmatpush.msra.mxu0 0.0
      %1390 = vmatpush.msra.mxu0 0.0
      %1391 = vmatpush.msra.mxu0 0.0
      %1392 = vmatpush.msra.mxu0 %v1374
      %1393 = vmatpush.msra.mxu0 %v1373
      %1394 = vmatpush.msra.mxu0 %v1372
      %1395 = vmatpush.msra.mxu0 %v1371
      %1396 = vmatmul.f32.gmra.mxu0 %v963
      %v1397 = vpop.f32.mrf.mxu0
      %v1398 = vadd.f32 0.0, %v1397
      %1399 = vmatmul.f32.gmra.mxu0 %v965
      %v1400 = vpop.f32.mrf.mxu0
      %v1401 = vadd.f32 0.0, %v1400
      %1402 = vmatmul.f32.gmra.mxu0 %v958
      %v1403 = vpop.f32.mrf.mxu0
      %v1404 = vadd.f32 0.0, %v1403
      %1405 = vmatmul.f32.gmra.mxu0 %v960
      %v1406 = vpop.f32.mrf.mxu0
      %v1407 = vadd.f32 0.0, %v1406
      %1408 = vmatmul.f32.gmra.mxu0 %v968
      %v1409 = vpop.f32.mrf.mxu0
      %v1410 = vadd.f32 0.0, %v1409
      %1411 = vmatmul.f32.gmra.mxu0 %v970
      %v1412 = vpop.f32.mrf.mxu0
      %v1413 = vadd.f32 0.0, %v1412
      %1414 = vmatmul.f32.gmra.mxu0 %v973
      %v1415 = vpop.f32.mrf.mxu0
      %v1416 = vadd.f32 0.0, %v1415
      %1417 = vmatmul.f32.gmra.mxu0 %v975
      %v1418 = vpop.f32.mrf.mxu0
      %v1419 = vadd.f32 0.0, %v1418
      %1420 = vmatmul.f32.gmra.mxu0 %v978
      %v1421 = vpop.f32.mrf.mxu0
      %v1422 = vadd.f32 0.0, %v1421
      %1423 = vmatmul.f32.gmra.mxu0 %v980
      %v1424 = vpop.f32.mrf.mxu0
      %v1425 = vadd.f32 0.0, %v1424
      %1426 = vmatmul.f32.gmra.mxu0 %v983
      %v1427 = vpop.f32.mrf.mxu0
      %v1428 = vadd.f32 0.0, %v1427
      %1429 = vmatmul.f32.gmra.mxu0 %v985
      %v1430 = vpop.f32.mrf.mxu0
      %v1431 = vadd.f32 0.0, %v1430
      %1432 = vmatmul.f32.gmra.mxu0 %v988
      %v1433 = vpop.f32.mrf.mxu0
      %v1434 = vadd.f32 0.0, %v1433
      %1435 = vmatmul.f32.gmra.mxu0 %v990
      %v1436 = vpop.f32.mrf.mxu0
      %v1437 = vadd.f32 0.0, %v1436
      %1438 = vmatmul.f32.gmra.mxu0 %v993
      %v1439 = vpop.f32.mrf.mxu0
      %v1440 = vadd.f32 0.0, %v1439
      %1441 = vmatmul.f32.gmra.mxu0 %v995
      %v1442 = vpop.f32.mrf.mxu0
      %v1443 = vadd.f32 0.0, %v1442
      %1444 = vmatmul.f32.gmra.mxu0 %v998
      %v1445 = vpop.f32.mrf.mxu0
      %v1446 = vadd.f32 0.0, %v1445
      %1447 = vmatmul.f32.gmra.mxu0 %v1000
      %v1448 = vpop.f32.mrf.mxu0
      %v1449 = vadd.f32 0.0, %v1448
      %1450 = vmatmul.f32.gmra.mxu0 %v1003
      %v1451 = vpop.f32.mrf.mxu0
      %v1452 = vadd.f32 0.0, %v1451
      %1453 = vmatmul.f32.gmra.mxu0 %v1005
      %v1454 = vpop.f32.mrf.mxu0
      %v1455 = vadd.f32 0.0, %v1454
      %1456 = vmatmul.f32.gmra.mxu0 %v1008
      %v1457 = vpop.f32.mrf.mxu0
      %v1458 = vadd.f32 0.0, %v1457
      %1459 = vmatmul.f32.gmra.mxu0 %v1010
      %v1460 = vpop.f32.mrf.mxu0
      %v1461 = vadd.f32 0.0, %v1460
      %1462 = vmatmul.f32.gmra.mxu0 %v1013
      %v1463 = vpop.f32.mrf.mxu0
      %v1464 = vadd.f32 0.0, %v1463
      %1465 = vmatmul.f32.gmra.mxu0 %v1015
      %v1466 = vpop.f32.mrf.mxu0
      %v1467 = vadd.f32 0.0, %v1466
      %1468 = vmatmul.f32.gmra.mxu0 %v1018
      %v1469 = vpop.f32.mrf.mxu0
      %v1470 = vadd.f32 0.0, %v1469
      %1471 = vmatmul.f32.gmra.mxu0 %v1020
      %v1472 = vpop.f32.mrf.mxu0
      %v1473 = vadd.f32 0.0, %v1472
      %1474 = vmatmul.f32.gmra.mxu0 %v1023
      %v1475 = vpop.f32.mrf.mxu0
      %v1476 = vadd.f32 0.0, %v1475
      %1477 = vmatmul.f32.gmra.mxu0 %v1025
      %v1478 = vpop.f32.mrf.mxu0
      %v1479 = vadd.f32 0.0, %v1478
      %1480 = vmatmul.f32.gmra.mxu0 %v1028
      %v1481 = vpop.f32.mrf.mxu0
      %v1482 = vadd.f32 0.0, %v1481
      %1483 = vmatmul.f32.gmra.mxu0 %v1030
      %v1484 = vpop.f32.mrf.mxu0
      %v1485 = vadd.f32 0.0, %v1484
      %1486 = vmatmul.f32.gmra.mxu0 %v1376
      %v1487 = vpop.f32.mrf.mxu0
      %v1488 = vadd.f32 0.0, %v1487
      %1489 = vmatmul.f32.gmra.mxu0 %v1378
      %v1490 = vpop.f32.mrf.mxu0
      %v1491 = vadd.f32 0.0, %v1490
      %1492 = vdwg.mxu0
      %v1493 = vadd.f32 %v1338, %v1398
      %v1494 = vadd.f32 %v1339, %v1401
      %v1495 = vadd.f32 %v1340, %v1404
      %v1496 = vadd.f32 %v1341, %v1407
      %v1497 = vadd.f32 %v1342, %v1410
      %v1498 = vadd.f32 %v1343, %v1413
      %v1499 = vadd.f32 %v1344, %v1416
      %v1500 = vadd.f32 %v1345, %v1419
      %v1501 = vadd.f32 %v1346, %v1422
      %v1502 = vadd.f32 %v1347, %v1425
      %v1503 = vadd.f32 %v1348, %v1428
      %v1504 = vadd.f32 %v1349, %v1431
      %v1505 = vadd.f32 %v1350, %v1434
      %v1506 = vadd.f32 %v1351, %v1437
      %v1507 = vadd.f32 %v1352, %v1440
      %v1508 = vadd.f32 %v1353, %v1443
      %v1509 = vadd.f32 %v1354, %v1446
      %v1510 = vadd.f32 %v1355, %v1449
      %v1511 = vadd.f32 %v1356, %v1452
      %v1512 = vadd.f32 %v1357, %v1455
      %v1513 = vadd.f32 %v1358, %v1458
      %v1514 = vadd.f32 %v1359, %v1461
      %v1515 = vadd.f32 %v1360, %v1464
      %v1516 = vadd.f32 %v1361, %v1467
      %v1517 = vadd.f32 %v1362, %v1470
      %v1518 = vadd.f32 %v1363, %v1473
      %v1519 = vadd.f32 %v1364, %v1476
      %v1520 = vadd.f32 %v1365, %v1479
      %v1521 = vadd.f32 %v1366, %v1482
      %v1522 = vadd.f32 %v1367, %v1485
      %v1523 = vadd.f32 %v1368, %v1488
      %v1524 = vadd.f32 %v1369, %v1491
      %s1525 = scalar_lea.vmem %s3, 128
      %v1526 = vld [vmem:[%s1525] sm:$0xff]
      %v1527 = vld [vmem:[%s1525 + $0x8] sm:$0xff]
      %v1528 = vld [vmem:[%s1525 + $0x10] sm:$0xff]
      %v1529 = vld [vmem:[%s1525 + $0x18] sm:$0xff]
      %v1530 = vsel %vm783, %v546, 0
      %v1532 = vsel %vm783, %v547, 0
      %1534 = vmatpush.msra.mxu0 0.0
      %1535 = vmatpush.msra.mxu0 0.0
      %1536 = vmatpush.msra.mxu0 0.0
      %1537 = vmatpush.msra.mxu0 0.0
      %1538 = vmatpush.msra.mxu0 0.0
      %1539 = vmatpush.msra.mxu0 0.0
      %1540 = vmatpush.msra.mxu0 0.0
      %1541 = vmatpush.msra.mxu0 0.0
      %1542 = vmatpush.msra.mxu0 0.0
      %1543 = vmatpush.msra.mxu0 0.0
      %1544 = vmatpush.msra.mxu0 0.0
      %1545 = vmatpush.msra.mxu0 0.0
      %1546 = vmatpush.msra.mxu0 %v1529
      %1547 = vmatpush.msra.mxu0 %v1528
      %1548 = vmatpush.msra.mxu0 %v1527
      %1549 = vmatpush.msra.mxu0 %v1526
      %1550 = vmatmul.f32.gmra.mxu0 %v788
      %v1551 = vpop.f32.mrf.mxu0
      %v1552 = vadd.f32 0.0, %v1551
      %1553 = vmatmul.f32.gmra.mxu0 %v790
      %v1554 = vpop.f32.mrf.mxu0
      %v1555 = vadd.f32 0.0, %v1554
      %1556 = vmatmul.f32.gmra.mxu0 %v784
      %v1557 = vpop.f32.mrf.mxu0
      %v1558 = vadd.f32 0.0, %v1557
      %1559 = vmatmul.f32.gmra.mxu0 %v786
      %v1560 = vpop.f32.mrf.mxu0
      %v1561 = vadd.f32 0.0, %v1560
      %1562 = vmatmul.f32.gmra.mxu0 %v792
      %v1563 = vpop.f32.mrf.mxu0
      %v1564 = vadd.f32 0.0, %v1563
      %1565 = vmatmul.f32.gmra.mxu0 %v794
      %v1566 = vpop.f32.mrf.mxu0
      %v1567 = vadd.f32 0.0, %v1566
      %1568 = vmatmul.f32.gmra.mxu0 %v796
      %v1569 = vpop.f32.mrf.mxu0
      %v1570 = vadd.f32 0.0, %v1569
      %1571 = vmatmul.f32.gmra.mxu0 %v798
      %v1572 = vpop.f32.mrf.mxu0
      %v1573 = vadd.f32 0.0, %v1572
      %1574 = vmatmul.f32.gmra.mxu0 %v800
      %v1575 = vpop.f32.mrf.mxu0
      %v1576 = vadd.f32 0.0, %v1575
      %1577 = vmatmul.f32.gmra.mxu0 %v802
      %v1578 = vpop.f32.mrf.mxu0
      %v1579 = vadd.f32 0.0, %v1578
      %1580 = vmatmul.f32.gmra.mxu0 %v804
      %v1581 = vpop.f32.mrf.mxu0
      %v1582 = vadd.f32 0.0, %v1581
      %1583 = vmatmul.f32.gmra.mxu0 %v806
      %v1584 = vpop.f32.mrf.mxu0
      %v1585 = vadd.f32 0.0, %v1584
      %1586 = vmatmul.f32.gmra.mxu0 %v808
      %v1587 = vpop.f32.mrf.mxu0
      %v1588 = vadd.f32 0.0, %v1587
      %1589 = vmatmul.f32.gmra.mxu0 %v810
      %v1590 = vpop.f32.mrf.mxu0
      %v1591 = vadd.f32 0.0, %v1590
      %1592 = vmatmul.f32.gmra.mxu0 %v812
      %v1593 = vpop.f32.mrf.mxu0
      %v1594 = vadd.f32 0.0, %v1593
      %1595 = vmatmul.f32.gmra.mxu0 %v814
      %v1596 = vpop.f32.mrf.mxu0
      %v1597 = vadd.f32 0.0, %v1596
      %1598 = vmatmul.f32.gmra.mxu0 %v816
      %v1599 = vpop.f32.mrf.mxu0
      %v1600 = vadd.f32 0.0, %v1599
      %1601 = vmatmul.f32.gmra.mxu0 %v818
      %v1602 = vpop.f32.mrf.mxu0
      %v1603 = vadd.f32 0.0, %v1602
      %1604 = vmatmul.f32.gmra.mxu0 %v820
      %v1605 = vpop.f32.mrf.mxu0
      %v1606 = vadd.f32 0.0, %v1605
      %1607 = vmatmul.f32.gmra.mxu0 %v822
      %v1608 = vpop.f32.mrf.mxu0
      %v1609 = vadd.f32 0.0, %v1608
      %1610 = vmatmul.f32.gmra.mxu0 %v824
      %v1611 = vpop.f32.mrf.mxu0
      %v1612 = vadd.f32 0.0, %v1611
      %1613 = vmatmul.f32.gmra.mxu0 %v826
      %v1614 = vpop.f32.mrf.mxu0
      %v1615 = vadd.f32 0.0, %v1614
      %1616 = vmatmul.f32.gmra.mxu0 %v828
      %v1617 = vpop.f32.mrf.mxu0
      %v1618 = vadd.f32 0.0, %v1617
      %1619 = vmatmul.f32.gmra.mxu0 %v830
      %v1620 = vpop.f32.mrf.mxu0
      %v1621 = vadd.f32 0.0, %v1620
      %1622 = vmatmul.f32.gmra.mxu0 %v832
      %v1623 = vpop.f32.mrf.mxu0
      %v1624 = vadd.f32 0.0, %v1623
      %1625 = vmatmul.f32.gmra.mxu0 %v834
      %v1626 = vpop.f32.mrf.mxu0
      %v1627 = vadd.f32 0.0, %v1626
      %1628 = vmatmul.f32.gmra.mxu0 %v836
      %v1629 = vpop.f32.mrf.mxu0
      %v1630 = vadd.f32 0.0, %v1629
      %1631 = vmatmul.f32.gmra.mxu0 %v838
      %v1632 = vpop.f32.mrf.mxu0
      %v1633 = vadd.f32 0.0, %v1632
      %1634 = vmatmul.f32.gmra.mxu0 %v840
      %v1635 = vpop.f32.mrf.mxu0
      %v1636 = vadd.f32 0.0, %v1635
      %1637 = vmatmul.f32.gmra.mxu0 %v842
      %v1638 = vpop.f32.mrf.mxu0
      %v1639 = vadd.f32 0.0, %v1638
      %1640 = vmatmul.f32.gmra.mxu0 %v1530
      %v1641 = vpop.f32.mrf.mxu0
      %v1642 = vadd.f32 0.0, %v1641
      %1643 = vmatmul.f32.gmra.mxu0 %v1532
      %v1644 = vpop.f32.mrf.mxu0
      %v1645 = vadd.f32 0.0, %v1644
      %1646 = vdwg.mxu0
      %v1647 = vadd.f32 %v1493, %v1552
      %v1648 = vadd.f32 %v1494, %v1555
      %v1649 = vadd.f32 %v1495, %v1558
      %v1650 = vadd.f32 %v1496, %v1561
      %v1651 = vadd.f32 %v1497, %v1564
      %v1652 = vadd.f32 %v1498, %v1567
      %v1653 = vadd.f32 %v1499, %v1570
      %v1654 = vadd.f32 %v1500, %v1573
      %v1655 = vadd.f32 %v1501, %v1576
      %v1656 = vadd.f32 %v1502, %v1579
      %v1657 = vadd.f32 %v1503, %v1582
      %v1658 = vadd.f32 %v1504, %v1585
      %v1659 = vadd.f32 %v1505, %v1588
      %v1660 = vadd.f32 %v1506, %v1591
      %v1661 = vadd.f32 %v1507, %v1594
      %v1662 = vadd.f32 %v1508, %v1597
      %v1663 = vadd.f32 %v1509, %v1600
      %v1664 = vadd.f32 %v1510, %v1603
      %v1665 = vadd.f32 %v1511, %v1606
      %v1666 = vadd.f32 %v1512, %v1609
      %v1667 = vadd.f32 %v1513, %v1612
      %v1668 = vadd.f32 %v1514, %v1615
      %v1669 = vadd.f32 %v1515, %v1618
      %v1670 = vadd.f32 %v1516, %v1621
      %v1671 = vadd.f32 %v1517, %v1624
      %v1672 = vadd.f32 %v1518, %v1627
      %v1673 = vadd.f32 %v1519, %v1630
      %v1674 = vadd.f32 %v1520, %v1633
      %v1675 = vadd.f32 %v1521, %v1636
      %v1676 = vadd.f32 %v1522, %v1639
      %v1677 = vadd.f32 %v1523, %v1642
      %v1678 = vadd.f32 %v1524, %v1645
      %s1679 = scalar_lea.vmem %s3, 160
      %v1680 = vld [vmem:[%s1679] sm:$0xff]
      %v1681 = vld [vmem:[%s1679 + $0x8] sm:$0xff]
      %v1682 = vld [vmem:[%s1679 + $0x10] sm:$0xff]
      %v1683 = vld [vmem:[%s1679 + $0x18] sm:$0xff]
      %v1684 = vsel %vm783, %v725, 0
      %v1687 = vsel %vm783, %v773, 0
      %1689 = vmatpush.msra.mxu0 0.0
      %1690 = vmatpush.msra.mxu0 0.0
      %1691 = vmatpush.msra.mxu0 0.0
      %1692 = vmatpush.msra.mxu0 0.0
      %1693 = vmatpush.msra.mxu0 0.0
      %1694 = vmatpush.msra.mxu0 0.0
      %1695 = vmatpush.msra.mxu0 0.0
      %1696 = vmatpush.msra.mxu0 0.0
      %1697 = vmatpush.msra.mxu0 0.0
      %1698 = vmatpush.msra.mxu0 0.0
      %1699 = vmatpush.msra.mxu0 0.0
      %1700 = vmatpush.msra.mxu0 0.0
      %1701 = vmatpush.msra.mxu0 %v1683
      %1702 = vmatpush.msra.mxu0 %v1682
      %1703 = vmatpush.msra.mxu0 %v1681
      %1704 = vmatpush.msra.mxu0 %v1680
      %1705 = vmatmul.f32.gmra.mxu0 %v1155
      %v1706 = vpop.f32.mrf.mxu0
      %v1707 = vadd.f32 0.0, %v1706
      %1708 = vmatmul.f32.gmra.mxu0 %v1158
      %v1709 = vpop.f32.mrf.mxu0
      %v1710 = vadd.f32 0.0, %v1709
      %1711 = vmatmul.f32.gmra.mxu0 %v1150
      %v1712 = vpop.f32.mrf.mxu0
      %v1713 = vadd.f32 0.0, %v1712
      %1714 = vmatmul.f32.gmra.mxu0 %v1153
      %v1715 = vpop.f32.mrf.mxu0
      %v1716 = vadd.f32 0.0, %v1715
      %1717 = vmatmul.f32.gmra.mxu0 %v1160
      %v1718 = vpop.f32.mrf.mxu0
      %v1719 = vadd.f32 0.0, %v1718
      %1720 = vmatmul.f32.gmra.mxu0 %v1163
      %v1721 = vpop.f32.mrf.mxu0
      %v1722 = vadd.f32 0.0, %v1721
      %1723 = vmatmul.f32.gmra.mxu0 %v1165
      %v1724 = vpop.f32.mrf.mxu0
      %v1725 = vadd.f32 0.0, %v1724
      %1726 = vmatmul.f32.gmra.mxu0 %v1168
      %v1727 = vpop.f32.mrf.mxu0
      %v1728 = vadd.f32 0.0, %v1727
      %1729 = vmatmul.f32.gmra.mxu0 %v1170
      %v1730 = vpop.f32.mrf.mxu0
      %v1731 = vadd.f32 0.0, %v1730
      %1732 = vmatmul.f32.gmra.mxu0 %v1173
      %v1733 = vpop.f32.mrf.mxu0
      %v1734 = vadd.f32 0.0, %v1733
      %1735 = vmatmul.f32.gmra.mxu0 %v1175
      %v1736 = vpop.f32.mrf.mxu0
      %v1737 = vadd.f32 0.0, %v1736
      %1738 = vmatmul.f32.gmra.mxu0 %v1178
      %v1739 = vpop.f32.mrf.mxu0
      %v1740 = vadd.f32 0.0, %v1739
      %1741 = vmatmul.f32.gmra.mxu0 %v1180
      %v1742 = vpop.f32.mrf.mxu0
      %v1743 = vadd.f32 0.0, %v1742
      %1744 = vmatmul.f32.gmra.mxu0 %v1183
      %v1745 = vpop.f32.mrf.mxu0
      %v1746 = vadd.f32 0.0, %v1745
      %1747 = vmatmul.f32.gmra.mxu0 %v1185
      %v1748 = vpop.f32.mrf.mxu0
      %v1749 = vadd.f32 0.0, %v1748
      %1750 = vmatmul.f32.gmra.mxu0 %v1188
      %v1751 = vpop.f32.mrf.mxu0
      %v1752 = vadd.f32 0.0, %v1751
      %1753 = vmatmul.f32.gmra.mxu0 %v1190
      %v1754 = vpop.f32.mrf.mxu0
      %v1755 = vadd.f32 0.0, %v1754
      %1756 = vmatmul.f32.gmra.mxu0 %v1193
      %v1757 = vpop.f32.mrf.mxu0
      %v1758 = vadd.f32 0.0, %v1757
      %1759 = vmatmul.f32.gmra.mxu0 %v1195
      %v1760 = vpop.f32.mrf.mxu0
      %v1761 = vadd.f32 0.0, %v1760
      %1762 = vmatmul.f32.gmra.mxu0 %v1198
      %v1763 = vpop.f32.mrf.mxu0
      %v1764 = vadd.f32 0.0, %v1763
      %1765 = vmatmul.f32.gmra.mxu0 %v1200
      %v1766 = vpop.f32.mrf.mxu0
      %v1767 = vadd.f32 0.0, %v1766
      %1768 = vmatmul.f32.gmra.mxu0 %v1203
      %v1769 = vpop.f32.mrf.mxu0
      %v1770 = vadd.f32 0.0, %v1769
      %1771 = vmatmul.f32.gmra.mxu0 %v1205
      %v1772 = vpop.f32.mrf.mxu0
      %v1773 = vadd.f32 0.0, %v1772
      %1774 = vmatmul.f32.gmra.mxu0 %v1208
      %v1775 = vpop.f32.mrf.mxu0
      %v1776 = vadd.f32 0.0, %v1775
      %1777 = vmatmul.f32.gmra.mxu0 %v1210
      %v1778 = vpop.f32.mrf.mxu0
      %v1779 = vadd.f32 0.0, %v1778
      %1780 = vmatmul.f32.gmra.mxu0 %v1213
      %v1781 = vpop.f32.mrf.mxu0
      %v1782 = vadd.f32 0.0, %v1781
      %1783 = vmatmul.f32.gmra.mxu0 %v1215
      %v1784 = vpop.f32.mrf.mxu0
      %v1785 = vadd.f32 0.0, %v1784
      %1786 = vmatmul.f32.gmra.mxu0 %v1218
      %v1787 = vpop.f32.mrf.mxu0
      %v1788 = vadd.f32 0.0, %v1787
      %1789 = vmatmul.f32.gmra.mxu0 %v1220
      %v1790 = vpop.f32.mrf.mxu0
      %v1791 = vadd.f32 0.0, %v1790
      %1792 = vmatmul.f32.gmra.mxu0 %v1223
      %v1793 = vpop.f32.mrf.mxu0
      %v1794 = vadd.f32 0.0, %v1793
      %1795 = vmatmul.f32.gmra.mxu0 %v1684
      %v1796 = vpop.f32.mrf.mxu0
      %v1797 = vadd.f32 0.0, %v1796
      %1798 = vmatmul.f32.gmra.mxu0 %v1687
      %v1799 = vpop.f32.mrf.mxu0
      %v1800 = vadd.f32 0.0, %v1799
      %1801 = vdwg.mxu0
      %v1802 = vadd.f32 %v1647, %v1707
      %v1803 = vadd.f32 %v1648, %v1710
      %v1804 = vadd.f32 %v1649, %v1713
      %v1805 = vadd.f32 %v1650, %v1716
      %v1806 = vadd.f32 %v1651, %v1719
      %v1807 = vadd.f32 %v1652, %v1722
      %v1808 = vadd.f32 %v1653, %v1725
      %v1809 = vadd.f32 %v1654, %v1728
      %v1810 = vadd.f32 %v1655, %v1731
      %v1811 = vadd.f32 %v1656, %v1734
      %v1812 = vadd.f32 %v1657, %v1737
      %v1813 = vadd.f32 %v1658, %v1740
      %v1814 = vadd.f32 %v1659, %v1743
      %v1815 = vadd.f32 %v1660, %v1746
      %v1816 = vadd.f32 %v1661, %v1749
      %v1817 = vadd.f32 %v1662, %v1752
      %v1818 = vadd.f32 %v1663, %v1755
      %v1819 = vadd.f32 %v1664, %v1758
      %v1820 = vadd.f32 %v1665, %v1761
      %v1821 = vadd.f32 %v1666, %v1764
      %v1822 = vadd.f32 %v1667, %v1767
      %v1823 = vadd.f32 %v1668, %v1770
      %v1824 = vadd.f32 %v1669, %v1773
      %v1825 = vadd.f32 %v1670, %v1776
      %v1826 = vadd.f32 %v1671, %v1779
      %v1827 = vadd.f32 %v1672, %v1782
      %v1828 = vadd.f32 %v1673, %v1785
      %v1829 = vadd.f32 %v1674, %v1788
      %v1830 = vadd.f32 %v1675, %v1791
      %v1831 = vadd.f32 %v1676, %v1794
      %v1832 = vadd.f32 %v1677, %v1797
      %v1833 = vadd.f32 %v1678, %v1800
      %s1834 = scalar_lea.vmem %s3, 192
      %v1835 = vld [vmem:[%s1834] sm:$0xff]
      %v1836 = vld [vmem:[%s1834 + $0x8] sm:$0xff]
      %v1837 = vld [vmem:[%s1834 + $0x10] sm:$0xff]
      %v1838 = vld [vmem:[%s1834 + $0x18] sm:$0xff]
      %1839 = vmatpush.msra.mxu0 0.0
      %1840 = vmatpush.msra.mxu0 0.0
      %1841 = vmatpush.msra.mxu0 0.0
      %1842 = vmatpush.msra.mxu0 0.0
      %1843 = vmatpush.msra.mxu0 0.0
      %1844 = vmatpush.msra.mxu0 0.0
      %1845 = vmatpush.msra.mxu0 0.0
      %1846 = vmatpush.msra.mxu0 0.0
      %1847 = vmatpush.msra.mxu0 0.0
      %1848 = vmatpush.msra.mxu0 0.0
      %1849 = vmatpush.msra.mxu0 0.0
      %1850 = vmatpush.msra.mxu0 0.0
      %1851 = vmatpush.msra.mxu0 %v1838
      %1852 = vmatpush.msra.mxu0 %v1837
      %1853 = vmatpush.msra.mxu0 %v1836
      %1854 = vmatpush.msra.mxu0 %v1835
      %1855 = vmatmul.f32.gmra.mxu0 %v958
      %v1856 = vpop.f32.mrf.mxu0
      %v1857 = vadd.f32 0.0, %v1856
      %1858 = vmatmul.f32.gmra.mxu0 %v960
      %v1859 = vpop.f32.mrf.mxu0
      %v1860 = vadd.f32 0.0, %v1859
      %1861 = vmatmul.f32.gmra.mxu0 %v968
      %v1862 = vpop.f32.mrf.mxu0
      %v1863 = vadd.f32 0.0, %v1862
      %1864 = vmatmul.f32.gmra.mxu0 %v970
      %v1865 = vpop.f32.mrf.mxu0
      %v1866 = vadd.f32 0.0, %v1865
      %1867 = vmatmul.f32.gmra.mxu0 %v973
      %v1868 = vpop.f32.mrf.mxu0
      %v1869 = vadd.f32 0.0, %v1868
      %1870 = vmatmul.f32.gmra.mxu0 %v975
      %v1871 = vpop.f32.mrf.mxu0
      %v1872 = vadd.f32 0.0, %v1871
      %1873 = vmatmul.f32.gmra.mxu0 %v978
      %v1874 = vpop.f32.mrf.mxu0
      %v1875 = vadd.f32 0.0, %v1874
      %1876 = vmatmul.f32.gmra.mxu0 %v980
      %v1877 = vpop.f32.mrf.mxu0
      %v1878 = vadd.f32 0.0, %v1877
      %1879 = vmatmul.f32.gmra.mxu0 %v983
      %v1880 = vpop.f32.mrf.mxu0
      %v1881 = vadd.f32 0.0, %v1880
      %1882 = vmatmul.f32.gmra.mxu0 %v985
      %v1883 = vpop.f32.mrf.mxu0
      %v1884 = vadd.f32 0.0, %v1883
      %1885 = vmatmul.f32.gmra.mxu0 %v988
      %v1886 = vpop.f32.mrf.mxu0
      %v1887 = vadd.f32 0.0, %v1886
      %1888 = vmatmul.f32.gmra.mxu0 %v990
      %v1889 = vpop.f32.mrf.mxu0
      %v1890 = vadd.f32 0.0, %v1889
      %1891 = vmatmul.f32.gmra.mxu0 %v993
      %v1892 = vpop.f32.mrf.mxu0
      %v1893 = vadd.f32 0.0, %v1892
      %1894 = vmatmul.f32.gmra.mxu0 %v995
      %v1895 = vpop.f32.mrf.mxu0
      %v1896 = vadd.f32 0.0, %v1895
      %1897 = vmatmul.f32.gmra.mxu0 %v998
      %v1898 = vpop.f32.mrf.mxu0
      %v1899 = vadd.f32 0.0, %v1898
      %1900 = vmatmul.f32.gmra.mxu0 %v1000
      %v1901 = vpop.f32.mrf.mxu0
      %v1902 = vadd.f32 0.0, %v1901
      %1903 = vmatmul.f32.gmra.mxu0 %v1003
      %v1904 = vpop.f32.mrf.mxu0
      %v1905 = vadd.f32 0.0, %v1904
      %1906 = vmatmul.f32.gmra.mxu0 %v1005
      %v1907 = vpop.f32.mrf.mxu0
      %v1908 = vadd.f32 0.0, %v1907
      %1909 = vmatmul.f32.gmra.mxu0 %v1008
      %v1910 = vpop.f32.mrf.mxu0
      %v1911 = vadd.f32 0.0, %v1910
      %1912 = vmatmul.f32.gmra.mxu0 %v1010
      %v1913 = vpop.f32.mrf.mxu0
      %v1914 = vadd.f32 0.0, %v1913
      %1915 = vmatmul.f32.gmra.mxu0 %v1013
      %v1916 = vpop.f32.mrf.mxu0
      %v1917 = vadd.f32 0.0, %v1916
      %1918 = vmatmul.f32.gmra.mxu0 %v1015
      %v1919 = vpop.f32.mrf.mxu0
      %v1920 = vadd.f32 0.0, %v1919
      %1921 = vmatmul.f32.gmra.mxu0 %v1018
      %v1922 = vpop.f32.mrf.mxu0
      %v1923 = vadd.f32 0.0, %v1922
      %1924 = vmatmul.f32.gmra.mxu0 %v1020
      %v1925 = vpop.f32.mrf.mxu0
      %v1926 = vadd.f32 0.0, %v1925
      %1927 = vmatmul.f32.gmra.mxu0 %v1023
      %v1928 = vpop.f32.mrf.mxu0
      %v1929 = vadd.f32 0.0, %v1928
      %1930 = vmatmul.f32.gmra.mxu0 %v1025
      %v1931 = vpop.f32.mrf.mxu0
      %v1932 = vadd.f32 0.0, %v1931
      %1933 = vmatmul.f32.gmra.mxu0 %v1028
      %v1934 = vpop.f32.mrf.mxu0
      %v1935 = vadd.f32 0.0, %v1934
      %1936 = vmatmul.f32.gmra.mxu0 %v1030
      %v1937 = vpop.f32.mrf.mxu0
      %v1938 = vadd.f32 0.0, %v1937
      %1939 = vmatmul.f32.gmra.mxu0 %v1376
      %v1940 = vpop.f32.mrf.mxu0
      %v1941 = vadd.f32 0.0, %v1940
      %1942 = vmatmul.f32.gmra.mxu0 %v1378
      %v1943 = vpop.f32.mrf.mxu0
      %v1944 = vadd.f32 0.0, %v1943
      %1945 = vmatmul.f32.gmra.mxu0 %v1028
      %v1946 = vpop.f32.mrf.mxu0
      %v1947 = vadd.f32 0.0, %v1946
      %1948 = vmatmul.f32.gmra.mxu0 %v1030
      %v1949 = vpop.f32.mrf.mxu0
      %v1950 = vadd.f32 0.0, %v1949
      %1951 = vdwg.mxu0
      %v1952 = vadd.f32 %v1802, %v1857
      %v1953 = vadd.f32 %v1803, %v1860
      %v1954 = vadd.f32 %v1804, %v1863
      %v1955 = vadd.f32 %v1805, %v1866
      %v1956 = vadd.f32 %v1806, %v1869
      %v1957 = vadd.f32 %v1807, %v1872
      %v1958 = vadd.f32 %v1808, %v1875
      %v1959 = vadd.f32 %v1809, %v1878
      %v1960 = vadd.f32 %v1810, %v1881
      %v1961 = vadd.f32 %v1811, %v1884
      %v1962 = vadd.f32 %v1812, %v1887
      %v1963 = vadd.f32 %v1813, %v1890
      %v1964 = vadd.f32 %v1814, %v1893
      %v1965 = vadd.f32 %v1815, %v1896
      %v1966 = vadd.f32 %v1816, %v1899
      %v1967 = vadd.f32 %v1817, %v1902
      %v1968 = vadd.f32 %v1818, %v1905
      %v1969 = vadd.f32 %v1819, %v1908
      %v1970 = vadd.f32 %v1820, %v1911
      %v1971 = vadd.f32 %v1821, %v1914
      %v1972 = vadd.f32 %v1822, %v1917
      %v1973 = vadd.f32 %v1823, %v1920
      %v1974 = vadd.f32 %v1824, %v1923
      %v1975 = vadd.f32 %v1825, %v1926
      %v1976 = vadd.f32 %v1826, %v1929
      %v1977 = vadd.f32 %v1827, %v1932
      %v1978 = vadd.f32 %v1828, %v1935
      %v1979 = vadd.f32 %v1829, %v1938
      %v1980 = vadd.f32 %v1830, %v1941
      %v1981 = vadd.f32 %v1831, %v1944
      %v1982 = vadd.f32 %v1832, %v1947
      %v1983 = vadd.f32 %v1833, %v1950
      %s1984 = scalar_lea.vmem %s3, 224
      %v1985 = vld [vmem:[%s1984] sm:$0xff]
      %v1986 = vld [vmem:[%s1984 + $0x8] sm:$0xff]
      %v1987 = vld [vmem:[%s1984 + $0x10] sm:$0xff]
      %v1988 = vld [vmem:[%s1984 + $0x18] sm:$0xff]
      %1989 = vmatpush.msra.mxu0 0.0
      %1990 = vmatpush.msra.mxu0 0.0
      %1991 = vmatpush.msra.mxu0 0.0
      %1992 = vmatpush.msra.mxu0 0.0
      %1993 = vmatpush.msra.mxu0 0.0
      %1994 = vmatpush.msra.mxu0 0.0
      %1995 = vmatpush.msra.mxu0 0.0
      %1996 = vmatpush.msra.mxu0 0.0
      %1997 = vmatpush.msra.mxu0 0.0
      %1998 = vmatpush.msra.mxu0 0.0
      %1999 = vmatpush.msra.mxu0 0.0
      %2000 = vmatpush.msra.mxu0 0.0
      %2001 = vmatpush.msra.mxu0 %v1988
      %2002 = vmatpush.msra.mxu0 %v1987
      %2003 = vmatpush.msra.mxu0 %v1986
      %2004 = vmatpush.msra.mxu0 %v1985
      %2005 = vmatmul.f32.gmra.mxu0 %v784
      %v2006 = vpop.f32.mrf.mxu0
      %v2007 = vadd.f32 0.0, %v2006
      %2008 = vmatmul.f32.gmra.mxu0 %v786
      %v2009 = vpop.f32.mrf.mxu0
      %v2010 = vadd.f32 0.0, %v2009
      %2011 = vmatmul.f32.gmra.mxu0 %v792
      %v2012 = vpop.f32.mrf.mxu0
      %v2013 = vadd.f32 0.0, %v2012
      %2014 = vmatmul.f32.gmra.mxu0 %v794
      %v2015 = vpop.f32.mrf.mxu0
      %v2016 = vadd.f32 0.0, %v2015
      %2017 = vmatmul.f32.gmra.mxu0 %v796
      %v2018 = vpop.f32.mrf.mxu0
      %v2019 = vadd.f32 0.0, %v2018
      %2020 = vmatmul.f32.gmra.mxu0 %v798
      %v2021 = vpop.f32.mrf.mxu0
      %v2022 = vadd.f32 0.0, %v2021
      %2023 = vmatmul.f32.gmra.mxu0 %v800
      %v2024 = vpop.f32.mrf.mxu0
      %v2025 = vadd.f32 0.0, %v2024
      %2026 = vmatmul.f32.gmra.mxu0 %v802
      %v2027 = vpop.f32.mrf.mxu0
      %v2028 = vadd.f32 0.0, %v2027
      %2029 = vmatmul.f32.gmra.mxu0 %v804
      %v2030 = vpop.f32.mrf.mxu0
      %v2031 = vadd.f32 0.0, %v2030
      %2032 = vmatmul.f32.gmra.mxu0 %v806
      %v2033 = vpop.f32.mrf.mxu0
      %v2034 = vadd.f32 0.0, %v2033
      %2035 = vmatmul.f32.gmra.mxu0 %v808
      %v2036 = vpop.f32.mrf.mxu0
      %v2037 = vadd.f32 0.0, %v2036
      %2038 = vmatmul.f32.gmra.mxu0 %v810
      %v2039 = vpop.f32.mrf.mxu0
      %v2040 = vadd.f32 0.0, %v2039
      %2041 = vmatmul.f32.gmra.mxu0 %v812
      %v2042 = vpop.f32.mrf.mxu0
      %v2043 = vadd.f32 0.0, %v2042
      %2044 = vmatmul.f32.gmra.mxu0 %v814
      %v2045 = vpop.f32.mrf.mxu0
      %v2046 = vadd.f32 0.0, %v2045
      %2047 = vmatmul.f32.gmra.mxu0 %v816
      %v2048 = vpop.f32.mrf.mxu0
      %v2049 = vadd.f32 0.0, %v2048
      %2050 = vmatmul.f32.gmra.mxu0 %v818
      %v2051 = vpop.f32.mrf.mxu0
      %v2052 = vadd.f32 0.0, %v2051
      %2053 = vmatmul.f32.gmra.mxu0 %v820
      %v2054 = vpop.f32.mrf.mxu0
      %v2055 = vadd.f32 0.0, %v2054
      %2056 = vmatmul.f32.gmra.mxu0 %v822
      %v2057 = vpop.f32.mrf.mxu0
      %v2058 = vadd.f32 0.0, %v2057
      %2059 = vmatmul.f32.gmra.mxu0 %v824
      %v2060 = vpop.f32.mrf.mxu0
      %v2061 = vadd.f32 0.0, %v2060
      %2062 = vmatmul.f32.gmra.mxu0 %v826
      %v2063 = vpop.f32.mrf.mxu0
      %v2064 = vadd.f32 0.0, %v2063
      %2065 = vmatmul.f32.gmra.mxu0 %v828
      %v2066 = vpop.f32.mrf.mxu0
      %v2067 = vadd.f32 0.0, %v2066
      %2068 = vmatmul.f32.gmra.mxu0 %v830
      %v2069 = vpop.f32.mrf.mxu0
      %v2070 = vadd.f32 0.0, %v2069
      %2071 = vmatmul.f32.gmra.mxu0 %v832
      %v2072 = vpop.f32.mrf.mxu0
      %v2073 = vadd.f32 0.0, %v2072
      %2074 = vmatmul.f32.gmra.mxu0 %v834
      %v2075 = vpop.f32.mrf.mxu0
      %v2076 = vadd.f32 0.0, %v2075
      %2077 = vmatmul.f32.gmra.mxu0 %v836
      %v2078 = vpop.f32.mrf.mxu0
      %v2079 = vadd.f32 0.0, %v2078
      %2080 = vmatmul.f32.gmra.mxu0 %v838
      %v2081 = vpop.f32.mrf.mxu0
      %v2082 = vadd.f32 0.0, %v2081
      %2083 = vmatmul.f32.gmra.mxu0 %v840
      %v2084 = vpop.f32.mrf.mxu0
      %v2085 = vadd.f32 0.0, %v2084
      %2086 = vmatmul.f32.gmra.mxu0 %v842
      %v2087 = vpop.f32.mrf.mxu0
      %v2088 = vadd.f32 0.0, %v2087
      %2089 = vmatmul.f32.gmra.mxu0 %v1530
      %v2090 = vpop.f32.mrf.mxu0
      %v2091 = vadd.f32 0.0, %v2090
      %2092 = vmatmul.f32.gmra.mxu0 %v1532
      %v2093 = vpop.f32.mrf.mxu0
      %v2094 = vadd.f32 0.0, %v2093
      %2095 = vmatmul.f32.gmra.mxu0 %v840
      %v2096 = vpop.f32.mrf.mxu0
      %v2097 = vadd.f32 0.0, %v2096
      %2098 = vmatmul.f32.gmra.mxu0 %v842
      %v2099 = vpop.f32.mrf.mxu0
      %v2100 = vadd.f32 0.0, %v2099
      %2101 = vdwg.mxu0
      %v2102 = vadd.f32 %v1952, %v2007
      %v2103 = vadd.f32 %v1953, %v2010
      %v2104 = vadd.f32 %v1954, %v2013
      %v2105 = vadd.f32 %v1955, %v2016
      %v2106 = vadd.f32 %v1956, %v2019
      %v2107 = vadd.f32 %v1957, %v2022
      %v2108 = vadd.f32 %v1958, %v2025
      %v2109 = vadd.f32 %v1959, %v2028
      %v2110 = vadd.f32 %v1960, %v2031
      %v2111 = vadd.f32 %v1961, %v2034
      %v2112 = vadd.f32 %v1962, %v2037
      %v2113 = vadd.f32 %v1963, %v2040
      %v2114 = vadd.f32 %v1964, %v2043
      %v2115 = vadd.f32 %v1965, %v2046
      %v2116 = vadd.f32 %v1966, %v2049
      %v2117 = vadd.f32 %v1967, %v2052
      %v2118 = vadd.f32 %v1968, %v2055
      %v2119 = vadd.f32 %v1969, %v2058
      %v2120 = vadd.f32 %v1970, %v2061
      %v2121 = vadd.f32 %v1971, %v2064
      %v2122 = vadd.f32 %v1972, %v2067
      %v2123 = vadd.f32 %v1973, %v2070
      %v2124 = vadd.f32 %v1974, %v2073
      %v2125 = vadd.f32 %v1975, %v2076
      %v2126 = vadd.f32 %v1976, %v2079
      %v2127 = vadd.f32 %v1977, %v2082
      %v2128 = vadd.f32 %v1978, %v2085
      %v2129 = vadd.f32 %v1979, %v2088
      %v2130 = vadd.f32 %v1980, %v2091
      %v2131 = vadd.f32 %v1981, %v2094
      %v2132 = vadd.f32 %v1982, %v2097
      %v2133 = vadd.f32 %v1983, %v2100
      %s2134 = scalar_lea.vmem %s3, 256
      %v2135 = vld [vmem:[%s2134] sm:$0xff]
      %v2136 = vld [vmem:[%s2134 + $0x8] sm:$0xff]
      %v2137 = vld [vmem:[%s2134 + $0x10] sm:$0xff]
      %v2138 = vld [vmem:[%s2134 + $0x18] sm:$0xff]
      %2139 = vmatpush.msra.mxu0 0.0
      %2140 = vmatpush.msra.mxu0 0.0
      %2141 = vmatpush.msra.mxu0 0.0
      %2142 = vmatpush.msra.mxu0 0.0
      %2143 = vmatpush.msra.mxu0 0.0
      %2144 = vmatpush.msra.mxu0 0.0
      %2145 = vmatpush.msra.mxu0 0.0
      %2146 = vmatpush.msra.mxu0 0.0
      %2147 = vmatpush.msra.mxu0 0.0
      %2148 = vmatpush.msra.mxu0 0.0
      %2149 = vmatpush.msra.mxu0 0.0
      %2150 = vmatpush.msra.mxu0 0.0
      %2151 = vmatpush.msra.mxu0 %v2138
      %2152 = vmatpush.msra.mxu0 %v2137
      %2153 = vmatpush.msra.mxu0 %v2136
      %2154 = vmatpush.msra.mxu0 %v2135
      %2155 = vmatmul.f32.gmra.mxu0 %v1150
      %v2156 = vpop.f32.mrf.mxu0
      %v2157 = vadd.f32 0.0, %v2156
      %2158 = vmatmul.f32.gmra.mxu0 %v1153
      %v2159 = vpop.f32.mrf.mxu0
      %v2160 = vadd.f32 0.0, %v2159
      %2161 = vmatmul.f32.gmra.mxu0 %v1160
      %v2162 = vpop.f32.mrf.mxu0
      %v2163 = vadd.f32 0.0, %v2162
      %2164 = vmatmul.f32.gmra.mxu0 %v1163
      %v2165 = vpop.f32.mrf.mxu0
      %v2166 = vadd.f32 0.0, %v2165
      %2167 = vmatmul.f32.gmra.mxu0 %v1165
      %v2168 = vpop.f32.mrf.mxu0
      %v2169 = vadd.f32 0.0, %v2168
      %2170 = vmatmul.f32.gmra.mxu0 %v1168
      %v2171 = vpop.f32.mrf.mxu0
      %v2172 = vadd.f32 0.0, %v2171
      %2173 = vmatmul.f32.gmra.mxu0 %v1170
      %v2174 = vpop.f32.mrf.mxu0
      %v2175 = vadd.f32 0.0, %v2174
      %2176 = vmatmul.f32.gmra.mxu0 %v1173
      %v2177 = vpop.f32.mrf.mxu0
      %v2178 = vadd.f32 0.0, %v2177
      %2179 = vmatmul.f32.gmra.mxu0 %v1175
      %v2180 = vpop.f32.mrf.mxu0
      %v2181 = vadd.f32 0.0, %v2180
      %2182 = vmatmul.f32.gmra.mxu0 %v1178
      %v2183 = vpop.f32.mrf.mxu0
      %v2184 = vadd.f32 0.0, %v2183
      %2185 = vmatmul.f32.gmra.mxu0 %v1180
      %v2186 = vpop.f32.mrf.mxu0
      %v2187 = vadd.f32 0.0, %v2186
      %2188 = vmatmul.f32.gmra.mxu0 %v1183
      %v2189 = vpop.f32.mrf.mxu0
      %v2190 = vadd.f32 0.0, %v2189
      %2191 = vmatmul.f32.gmra.mxu0 %v1185
      %v2192 = vpop.f32.mrf.mxu0
      %v2193 = vadd.f32 0.0, %v2192
      %2194 = vmatmul.f32.gmra.mxu0 %v1188
      %v2195 = vpop.f32.mrf.mxu0
      %v2196 = vadd.f32 0.0, %v2195
      %2197 = vmatmul.f32.gmra.mxu0 %v1190
      %v2198 = vpop.f32.mrf.mxu0
      %v2199 = vadd.f32 0.0, %v2198
      %2200 = vmatmul.f32.gmra.mxu0 %v1193
      %v2201 = vpop.f32.mrf.mxu0
      %v2202 = vadd.f32 0.0, %v2201
      %2203 = vmatmul.f32.gmra.mxu0 %v1195
      %v2204 = vpop.f32.mrf.mxu0
      %v2205 = vadd.f32 0.0, %v2204
      %2206 = vmatmul.f32.gmra.mxu0 %v1198
      %v2207 = vpop.f32.mrf.mxu0
      %v2208 = vadd.f32 0.0, %v2207
      %2209 = vmatmul.f32.gmra.mxu0 %v1200
      %v2210 = vpop.f32.mrf.mxu0
      %v2211 = vadd.f32 0.0, %v2210
      %2212 = vmatmul.f32.gmra.mxu0 %v1203
      %v2213 = vpop.f32.mrf.mxu0
      %v2214 = vadd.f32 0.0, %v2213
      %2215 = vmatmul.f32.gmra.mxu0 %v1205
      %v2216 = vpop.f32.mrf.mxu0
      %v2217 = vadd.f32 0.0, %v2216
      %2218 = vmatmul.f32.gmra.mxu0 %v1208
      %v2219 = vpop.f32.mrf.mxu0
      %v2220 = vadd.f32 0.0, %v2219
      %2221 = vmatmul.f32.gmra.mxu0 %v1210
      %v2222 = vpop.f32.mrf.mxu0
      %v2223 = vadd.f32 0.0, %v2222
      %2224 = vmatmul.f32.gmra.mxu0 %v1213
      %v2225 = vpop.f32.mrf.mxu0
      %v2226 = vadd.f32 0.0, %v2225
      %2227 = vmatmul.f32.gmra.mxu0 %v1215
      %v2228 = vpop.f32.mrf.mxu0
      %v2229 = vadd.f32 0.0, %v2228
      %2230 = vmatmul.f32.gmra.mxu0 %v1218
      %v2231 = vpop.f32.mrf.mxu0
      %v2232 = vadd.f32 0.0, %v2231
      %2233 = vmatmul.f32.gmra.mxu0 %v1220
      %v2234 = vpop.f32.mrf.mxu0
      %v2235 = vadd.f32 0.0, %v2234
      %2236 = vmatmul.f32.gmra.mxu0 %v1223
      %v2237 = vpop.f32.mrf.mxu0
      %v2238 = vadd.f32 0.0, %v2237
      %2239 = vmatmul.f32.gmra.mxu0 %v1684
      %v2240 = vpop.f32.mrf.mxu0
      %v2241 = vadd.f32 0.0, %v2240
      %2242 = vmatmul.f32.gmra.mxu0 %v1687
      %v2243 = vpop.f32.mrf.mxu0
      %v2244 = vadd.f32 0.0, %v2243
      %2245 = vmatmul.f32.gmra.mxu0 %v1220
      %v2246 = vpop.f32.mrf.mxu0
      %v2247 = vadd.f32 0.0, %v2246
      %2248 = vmatmul.f32.gmra.mxu0 %v1223
      %v2249 = vpop.f32.mrf.mxu0
      %v2250 = vadd.f32 0.0, %v2249
      %2251 = vdwg.mxu0
      %v2252 = vadd.f32 %v2102, %v2157
      %v2253 = vadd.f32 %v2103, %v2160
      %v2254 = vadd.f32 %v2104, %v2163
      %v2255 = vadd.f32 %v2105, %v2166
      %v2256 = vadd.f32 %v2106, %v2169
      %v2257 = vadd.f32 %v2107, %v2172
      %v2258 = vadd.f32 %v2108, %v2175
      %v2259 = vadd.f32 %v2109, %v2178
      %v2260 = vadd.f32 %v2110, %v2181
      %v2261 = vadd.f32 %v2111, %v2184
      %v2262 = vadd.f32 %v2112, %v2187
      %v2263 = vadd.f32 %v2113, %v2190
      %v2264 = vadd.f32 %v2114, %v2193
      %v2265 = vadd.f32 %v2115, %v2196
      %v2266 = vadd.f32 %v2116, %v2199
      %v2267 = vadd.f32 %v2117, %v2202
      %v2268 = vadd.f32 %v2118, %v2205
      %v2269 = vadd.f32 %v2119, %v2208
      %v2270 = vadd.f32 %v2120, %v2211
      %v2271 = vadd.f32 %v2121, %v2214
      %v2272 = vadd.f32 %v2122, %v2217
      %v2273 = vadd.f32 %v2123, %v2220
      %v2274 = vadd.f32 %v2124, %v2223
      %v2275 = vadd.f32 %v2125, %v2226
      %v2276 = vadd.f32 %v2126, %v2229
      %v2277 = vadd.f32 %v2127, %v2232
      %v2278 = vadd.f32 %v2128, %v2235
      %v2279 = vadd.f32 %v2129, %v2238
      %v2280 = vadd.f32 %v2130, %v2241
      %v2281 = vadd.f32 %v2131, %v2244
      %v2282 = vadd.f32 %v2132, %v2247
      %v2283 = vadd.f32 %v2133, %v2250
      %2284 = vst.msk [vmem:[%s198] sm:$0xff] %vm783, %v2252
      %2285 = vst.msk [vmem:[%s198 + $0x8] sm:$0xff] %vm783, %v2253
      %2286 = vst.msk [vmem:[%s198 + $0x10] sm:$0xff] %vm783, %v2254
      %2287 = vst.msk [vmem:[%s198 + $0x18] sm:$0xff] %vm783, %v2255
      %2288 = vst.msk [vmem:[%s198 + $0x20] sm:$0xff] %vm783, %v2256
      %2289 = vst.msk [vmem:[%s198 + $0x28] sm:$0xff] %vm783, %v2257
      %2290 = vst.msk [vmem:[%s198 + $0x30] sm:$0xff] %vm783, %v2258
      %2291 = vst.msk [vmem:[%s198 + $0x38] sm:$0xff] %vm783, %v2259
      %2292 = vst.msk [vmem:[%s198 + $0x40] sm:$0xff] %vm783, %v2260
      %2293 = vst.msk [vmem:[%s198 + $0x48] sm:$0xff] %vm783, %v2261
      %2294 = vst.msk [vmem:[%s198 + $0x50] sm:$0xff] %vm783, %v2262
      %2295 = vst.msk [vmem:[%s198 + $0x58] sm:$0xff] %vm783, %v2263
      %2296 = vst.msk [vmem:[%s198 + $0x60] sm:$0xff] %vm783, %v2264
      %2297 = vst.msk [vmem:[%s198 + $0x68] sm:$0xff] %vm783, %v2265
      %2298 = vst.msk [vmem:[%s198 + $0x70] sm:$0xff] %vm783, %v2266
      %2299 = vst.msk [vmem:[%s198 + $0x78] sm:$0xff] %vm783, %v2267
      %2300 = vst.msk [vmem:[%s198 + $0x80] sm:$0xff] %vm783, %v2268
      %2301 = vst.msk [vmem:[%s198 + $0x88] sm:$0xff] %vm783, %v2269
      %2302 = vst.msk [vmem:[%s198 + $0x90] sm:$0xff] %vm783, %v2270
      %2303 = vst.msk [vmem:[%s198 + $0x98] sm:$0xff] %vm783, %v2271
      %2304 = vst.msk [vmem:[%s198 + $0xa0] sm:$0xff] %vm783, %v2272
      %2305 = vst.msk [vmem:[%s198 + $0xa8] sm:$0xff] %vm783, %v2273
      %2306 = vst.msk [vmem:[%s198 + $0xb0] sm:$0xff] %vm783, %v2274
      %2307 = vst.msk [vmem:[%s198 + $0xb8] sm:$0xff] %vm783, %v2275
      %2308 = vst.msk [vmem:[%s198 + $0xc0] sm:$0xff] %vm783, %v2276
      %2309 = vst.msk [vmem:[%s198 + $0xc8] sm:$0xff] %vm783, %v2277
      %2310 = vst.msk [vmem:[%s198 + $0xd0] sm:$0xff] %vm783, %v2278
      %2311 = vst.msk [vmem:[%s198 + $0xd8] sm:$0xff] %vm783, %v2279
      %2312 = vst.msk [vmem:[%s198 + $0xe0] sm:$0xff] %vm783, %v2280
      %2313 = vst.msk [vmem:[%s198 + $0xe8] sm:$0xff] %vm783, %v2281
      %2314 = vst.msk [vmem:[%s198 + $0xf0] sm:$0xff] %vm783, %v2282
      %2315 = vst.msk [vmem:[%s198 + $0xf8] sm:$0xff] %vm783, %v2283
      %p2316 = scmp.lt.s32.totalorder %s16, 1
      %s2317 = scalar_select %p2316, %s16, 1
      %s2318 = smul.addr %s2317, 32
      %s2319 = smul.addr %s2318, 8
      %s2320 = scalar_lea.vmem %s4, %s2319
      // Predicated region
      $region37: #{tpu_custom_call.1} parent=35 // pred_check
        %p2321 = pneg %p123
      $region38: #{tpu_custom_call.1} parent=35 // pred_check_branch
        %2323 = sbr.rel (%p2321) target = $region40
      $region39: #{tpu_custom_call.1} parent=35 // pred_region
        _
      $region40: #{tpu_custom_call.1} parent=35 // pred_fallthru
        _
    $region36: #{tpu_custom_call.1} parent=5 // pred_fallthru
      _
    %p2324 = scmp.le.s32.totalorder 2, %s11
    // Predicated region
    $region41: #{tpu_custom_call.1} parent=5 // pred_check
      %p2325 = pneg %p2324
    $region42: #{tpu_custom_call.1} parent=5 // pred_check_branch
      %2327 = sbr.rel (%p2325) target = $region44
    $region43: #{tpu_custom_call.1} parent=5 // pred_region
      %s2328 = ssub.s32 %s11, 2
      // Predicated region
      $region45: #{tpu_custom_call.1} parent=43 // pred_check
        %p2329 = pneg %p129
      $region46: #{tpu_custom_call.1} parent=43 // pred_check_branch
        %2331 = sbr.rel (%p2329) target = $region48
      $region47: #{tpu_custom_call.1} parent=43 // pred_region
        %p2332 = scmp.lt.s32.totalorder %s17, 1
        %s2333 = scalar_select %p2332, %s17, 1
        %s2334 = smul.addr %s2333, 32
        %s2335 = smul.addr %s2334, 8
        %s2336 = scalar_lea.vmem %s4, %s2335
      $region48: #{tpu_custom_call.1} parent=43 // pred_fallthru
        _
    $region44: #{tpu_custom_call.1} parent=5 // pred_fallthru
      _
  $region6: #{tpu_custom_call.1} parent=0 // loop_footer
    %s15 = sadd.s32 1, %s11
  $region7: #{tpu_custom_call.1} parent=0 // loop_footer_branch
    %10 = sbr.rel target = $region3
  $region8: #{tpu_custom_call.1} parent=0 // loop_exit
    _

</llo_original>
